<compile_context>
chip_gen: v7x
topology: tpu7x:2x2x1
jax: 0.10.0
libtpu: 0.0.40
codegen_flags: <defaults>
</compile_context>

<pallas_src>
import functools

import jax
import jax.numpy as jnp
from jax import lax
from jax.experimental import pallas as pl
from jax.experimental.pallas import tpu as pltpu

# ---- dimensions fixed by the PyTorch module -------------------------------
T = 750            # time samples
TPAD = 768         # per-sample lane stride (multiple of 128)
H = 2              # EEG electrodes (conv "height")
K1, P1 = 51, 25    # conv1 temporal kernel / padding
C1 = 16            # conv1 out channels
C2 = 32            # conv2/conv3 out channels
K3, P3 = 15, 7     # conv3 temporal kernel / padding
T1 = T // 4        # 187 after AvgPool2d((1,4))
T1P = T1 + 2 * P3  # 201 = pooled length + conv3 zero halo
T2 = T1 // 8       # 23  after AvgPool2d((1,8))
NFEAT = C2 * T2    # 736
EPS = 1e-5
TB = 32            # max samples per grid step


def _elu(v):
    # ELU(alpha=1.0); clamp exp arg so the unselected branch stays finite.
    return jnp.where(v > 0, v, jnp.exp(jnp.minimum(v, 0.0)) - 1.0)


# ----------------------------- Pallas kernel -------------------------------
def eegnet_kernel(tb, x_ref, w12_ref, b12_ref, w3_ref, b3_ref, p4_ref, p8_ref,
                  wt_ref, sel_ref, red_ref, bo_ref, o_ref, fst_ref):
    """tb samples per grid step; all heavy math on the MXU, head batched."""
    w12 = w12_ref[...]          # (32, 102) bf16  conv1*BN1*conv2*BN2 folded
    b12 = b12_ref[...]          # (32, 1)   f32   folded BN shift
    w3 = w3_ref[...]            # (32, 480) bf16  conv3 taps, BN3 scale folded
    b3 = b3_ref[...]            # (32, 1)   f32   BN3 shift
    p4 = p4_ref[...]            # (768, 201) bf16 AvgPool(1,4) + conv3 halo cols
    p8 = p8_ref[...]            # (187, 23)  bf16 AvgPool(1,8)

    def body(s, carry):
        xs = x_ref[s]                                                   # (102, 768) bf16
        # conv1 + BN1 + conv2 + BN2 as a single folded matmul, then ELU.
        y = jnp.dot(w12, xs, preferred_element_type=jnp.float32) + b12  # (32, 768)
        z = _elu(y).astype(jnp.bfloat16)
        # AvgPool2d((1,4)) as matmul; halo cols 0..6 / 194..200 are exact zeros.
        z4 = jnp.dot(z, p4, preferred_element_type=jnp.float32)         # (32, 201)
        zb = z4.astype(jnp.bfloat16)                                    # bf16 BEFORE slicing
        # conv3: 15 shifted views -> single contraction-480 matmul.
        stk = jnp.concatenate([zb[:, k:k + T1] for k in range(K3)],
                              axis=0)                                   # (480, 187)
        u = jnp.dot(w3, stk, preferred_element_type=jnp.float32) + b3   # (32, 187)
        u = _elu(u).astype(jnp.bfloat16)
        # AvgPool2d((1,8)) as matmul -> per-sample features (32, 23).
        f = jnp.dot(u, p8, preferred_element_type=jnp.float32)
        fst_ref[pl.ds(pl.multiple_of(s * C2, C2), C2), :] = f
        return carry

    lax.fori_loop(0, tb, body, 0)

    # Batched classifier head Linear(736 -> 2): one elementwise mul + two tiny
    # f32 matmuls replace 2*tb cross-lane reductions.
    feats = fst_ref[...]                                                # (tb*32, 23) f32
    m = jnp.concatenate([feats * wt_ref[0], feats * wt_ref[1]], axis=1)  # (tb*32, 46)
    r = jnp.dot(m, sel_ref[...], preferred_element_type=jnp.float32)     # (tb*32, 2)
    logits = jnp.dot(red_ref[...], r, preferred_element_type=jnp.float32)  # (tb, 2)
    o_ref[0] = logits + bo_ref[...]


# ------------------------- parameters (deterministic) ----------------------
def init_params(key):
    ks = jax.random.split(key, 8)
    def bn(k, c):
        k1, k2, k3, k4 = jax.random.split(k, 4)
        return dict(gamma=jax.random.uniform(k1, (c,), minval=0.5, maxval=1.5),
                    beta=jax.random.normal(k2, (c,)) * 0.1,
                    mean=jax.random.normal(k3, (c,)) * 0.1,
                    var=jax.random.uniform(k4, (c,), minval=0.5, maxval=1.5))
    return dict(
        w1=jax.random.normal(ks[0], (C1, 1, 1, K1), jnp.float32) * 0.1,
        w2=jax.random.normal(ks[1], (C2, 1, 2, 1), jnp.float32) * 0.1,
        w3=jax.random.normal(ks[2], (C2, C2, 1, K3), jnp.float32) * 0.1,
        wout=jax.random.normal(ks[3], (2, NFEAT), jnp.float32) * 0.05,
        bout=jax.random.normal(ks[4], (2,), jnp.float32) * 0.05,
        bn1=bn(ks[5], C1), bn2=bn(ks[6], C2), bn3=bn(ks[7], C2))


def _fold_bn(d):
    scale = d['gamma'] / jnp.sqrt(d['var'] + EPS)
    shift = d['beta'] - d['mean'] * scale
    return scale, shift


# ------------------------------- wrapper ------------------------------------
def eegnet_forward_pallas(x, p, tb=None):
    B = x.shape[0]
    if tb is None:
        # Keep >= 2 grid steps when B >= 2 so both v7x TensorCores get work,
        # capped at TB so the block stays well inside VMEM on all generations.
        tb = max(1, min(TB, -(-B // 2)))
    nb = -(-B // tb)
    Bp = nb * tb

    # ---- im2col for conv1: 51 static slices (no XLA gather), bf16, 768 stride
    xt = x[:, 0, :, :]                                               # (B, 2, 750)
    xt = jnp.pad(xt, ((0, Bp - B), (0, 0), (P1, P1)))                # (Bp, 2, 800)
    slabs = jnp.stack([xt[:, :, k:k + T] for k in range(K1)], axis=2)  # (Bp,2,51,750)
    slabs = jnp.pad(slabs, ((0, 0), (0, 0), (0, 0), (0, TPAD - T)))    # (Bp,2,51,768)
    xim = slabs.reshape(Bp, H * K1, TPAD).astype(jnp.bfloat16)         # (Bp,102,768)

    # ---- fold conv1*BN1*conv2*BN2 into one (32, 102) matrix (f32, then bf16)
    s1, b1 = _fold_bn(p['bn1'])
    s1s = jnp.concatenate([s1, s1])                                  # (32,)
    b1s = jnp.concatenate([b1, b1])                                  # (32,)
    w1 = p['w1'][:, 0, 0, :]                                         # (16, 51)
    w1b = jnp.zeros((C2, H * K1), jnp.float32)
    w1b = w1b.at[:C1, :K1].set(w1).at[C1:, K1:].set(w1)
    w1b = w1b * s1s[:, None]                                         # BN1 scale folded

    s2, b2 = _fold_bn(p['bn2'])
    w2s = p['w2'][:, 0, :, 0]                                        # (32, 2)
    c = jnp.arange(C2); g = c // 2
    w2m = jnp.zeros((C2, C2), jnp.float32)
    w2m = w2m.at[c, g].set(w2s[:, 0]).at[c, g + C1].set(w2s[:, 1])
    w2m = w2m * s2[:, None]                                          # BN2 scale folded

    w12 = (w2m @ w1b).astype(jnp.bfloat16)                           # (32, 102)
    b12 = (w2m @ b1s + b2).reshape(C2, 1)                            # (32, 1) f32

    # ---- conv3 taps flattened to (32, 480), BN3 scale folded
    s3, b3 = _fold_bn(p['bn3'])
    w3f = jnp.transpose(p['w3'][:, :, 0, :], (0, 2, 1)).reshape(C2, K3 * C2)
    w3f = (w3f * s3[:, None]).astype(jnp.bfloat16)
    b3 = b3.reshape(C2, 1)

    # ---- pooling matrices.  p4 is pre-padded: its rows cover the 768-lane
    # padded conv1 output, its first/last 7 columns are the conv3 zero halo.
    j4 = jnp.arange(T1)
    p4p = jnp.zeros((TPAD, T1P), jnp.float32)
    for r in range(4):
        p4p = p4p.at[4 * j4 + r, P3 + j4].set(0.25)
    p4p = p4p.astype(jnp.bfloat16)
    j8 = jnp.arange(T2)
    p8m = jnp.zeros((T1, T2), jnp.float32)
    for r in range(8):
        p8m = p8m.at[8 * j8 + r, j8].set(0.125)
    p8m = p8m.astype(jnp.bfloat16)

    # ---- batched classifier-head matrices (channel-major flatten = reshape)
    woutr = p['wout'].reshape(2, C2, T2)                             # (2, 32, 23)
    wt = jnp.tile(woutr, (1, tb, 1))                                 # (2, tb*32, 23)
    sel = jnp.zeros((2 * T2, 2), jnp.float32)
    sel = sel.at[:T2, 0].set(1.0).at[T2:, 1].set(1.0)                # lane-sum selector
    sidx = jnp.arange(tb)
    red = jnp.zeros((tb, tb * C2), jnp.float32)
    red = red.at[sidx[:, None],
                 sidx[:, None] * C2 + jnp.arange(C2)[None, :]].set(1.0)
    bo = p['bout'].reshape(1, 2)

    out = pl.pallas_call(
        functools.partial(eegnet_kernel, tb),
        out_shape=jax.ShapeDtypeStruct((nb, tb, 2), jnp.float32),
        grid_spec=pltpu.PrefetchScalarGridSpec(
            num_scalar_prefetch=0,
            grid=(nb,),
            in_specs=[
                pl.BlockSpec((tb, H * K1, TPAD), lambda b: (b, 0, 0)),   # im2col x
                pl.BlockSpec((C2, H * K1), lambda b: (0, 0)),            # w12 (bf16)
                pl.BlockSpec((C2, 1), lambda b: (0, 0)),                 # folded shift
                pl.BlockSpec((C2, K3 * C2), lambda b: (0, 0)),           # w3 (bf16)
                pl.BlockSpec((C2, 1), lambda b: (0, 0)),                 # bn3 shift
                pl.BlockSpec((TPAD, T1P), lambda b: (0, 0)),             # pool4 (padded)
                pl.BlockSpec((T1, T2), lambda b: (0, 0)),                # pool8
                pl.BlockSpec((2, tb * C2, T2), lambda b: (0, 0, 0)),     # head w (tiled)
                pl.BlockSpec((2 * T2, 2), lambda b: (0, 0)),             # lane-sum sel
                pl.BlockSpec((tb, tb * C2), lambda b: (0, 0)),           # block-sum red
                pl.BlockSpec((1, 2), lambda b: (0, 0)),                  # head bias
            ],
            out_specs=pl.BlockSpec((1, tb, 2), lambda b: (b, 0, 0)),
            scratch_shapes=[pltpu.VMEM((tb * C2, T2), jnp.float32)],
        ),
        compiler_params=pltpu.CompilerParams(
            dimension_semantics=("parallel",),
            vmem_limit_bytes=32 * 1024 * 1024),
    )(xim, w12, b12, w3f, b3, p4p, p8m, wt, sel, red, bo)

    # (nb, tb, 2) -> (Bp, 2), drop batch padding.
    return out.reshape(Bp, 2)[:B]


# ----------------------- pure-JAX reference (for checking) ------------------
def eegnet_forward_reference(x, p):
    dn = ('NCHW', 'OIHW', 'NCHW')

    def bn(v, d):
        scale = d['gamma'] / jnp.sqrt(d['var'] + EPS)
        shift = d['beta'] - d['mean'] * scale
        return v * scale[None, :, None, None] + shift[None, :, None, None]

    def avgpool_w(v, k):
        B, C, Hh, W = v.shape
        n = W // k
        return v[:, :, :, :n * k].reshape(B, C, Hh, n, k).mean(axis=-1)

    y = lax.conv_general_dilated(x, p['w1'], (1, 1), [(0, 0), (P1, P1)],
                                 dimension_numbers=dn)
    y = bn(y, p['bn1'])
    z = lax.conv_general_dilated(y, p['w2'], (1, 1), [(0, 0), (0, 0)],
                                 dimension_numbers=dn, feature_group_count=C1)
    z = avgpool_w(_elu(bn(z, p['bn2'])), 4)
    u = lax.conv_general_dilated(z, p['w3'], (1, 1), [(0, 0), (P3, P3)],
                                 dimension_numbers=dn)
    u = avgpool_w(_elu(bn(u, p['bn3'])), 8)
    flat = u.reshape(x.shape[0], -1)
    return flat @ p['wout'].T + p['bout']


if __name__ == "__main__":
    key = jax.random.PRNGKey(0)
    pkey, xkey = jax.random.split(key)
    params = init_params(pkey)

    B = 2
    x = jax.random.normal(xkey, (B, 1, H, T), jnp.float32)   # NCHW, like PyTorch

    out = jax.block_until_ready(eegnet_forward_pallas(x, params))
    ref = jax.block_until_ready(eegnet_forward_reference(x, params))

    assert out.shape == (B, 2), out.shape
    # Tolerance accounts for bf16 MXU operands (f32 accumulation) vs f32 reference.
    assert jnp.allclose(out, ref, atol=3e-2, rtol=3e-2), (out, ref)
    print("KERNEL_OK")
</pallas_src>

<mosaic_0001>
module attributes {stable_mosaic.version = 11 : i64} {
  func.func @eegnet_kernel(%arg0: i32, %arg1: memref<1x102x768xbf16, #tpu.memory_space<vmem>>, %arg2: memref<32x102xbf16, #tpu.memory_space<vmem>>, %arg3: memref<32x1xf32, #tpu.memory_space<vmem>>, %arg4: memref<32x480xbf16, #tpu.memory_space<vmem>>, %arg5: memref<32x1xf32, #tpu.memory_space<vmem>>, %arg6: memref<768x201xbf16, #tpu.memory_space<vmem>>, %arg7: memref<187x23xbf16, #tpu.memory_space<vmem>>, %arg8: memref<2x32x23xf32, #tpu.memory_space<vmem>>, %arg9: memref<46x2xf32, #tpu.memory_space<vmem>>, %arg10: memref<1x32xf32, #tpu.memory_space<vmem>>, %arg11: memref<1x2xf32, #tpu.memory_space<vmem>>, %arg12: memref<1x1x2xf32, #tpu.memory_space<vmem>>, %arg13: memref<32x23xf32, #tpu.memory_space<vmem>>) attributes {dimension_semantics = [#tpu.dimension_semantics<parallel>], iteration_bounds = array<i64: 2>, scalar_prefetch = 0 : i64, scratch_operands = 1 : i64, tpu.core_type = #tpu.core_type<tc>, window_params = [{transform_indices = @transform_0, window_bounds = array<i64: 1, 102, 768>}, {pipeline_mode = #tpu.pipeline_mode<synchronous>, transform_indices = @transform_1, window_bounds = array<i64: 32, 102>}, {pipeline_mode = #tpu.pipeline_mode<synchronous>, transform_indices = @transform_2, window_bounds = array<i64: 32, 1>}, {pipeline_mode = #tpu.pipeline_mode<synchronous>, transform_indices = @transform_3, window_bounds = array<i64: 32, 480>}, {pipeline_mode = #tpu.pipeline_mode<synchronous>, transform_indices = @transform_4, window_bounds = array<i64: 32, 1>}, {pipeline_mode = #tpu.pipeline_mode<synchronous>, transform_indices = @transform_5, window_bounds = array<i64: 768, 201>}, {pipeline_mode = #tpu.pipeline_mode<synchronous>, transform_indices = @transform_6, window_bounds = array<i64: 187, 23>}, {pipeline_mode = #tpu.pipeline_mode<synchronous>, transform_indices = @transform_7, window_bounds = array<i64: 2, 32, 23>}, {pipeline_mode = #tpu.pipeline_mode<synchronous>, transform_indices = @transform_8, window_bounds = array<i64: 46, 2>}, {pipeline_mode = #tpu.pipeline_mode<synchronous>, transform_indices = @transform_9, window_bounds = array<i64: 1, 32>}, {pipeline_mode = #tpu.pipeline_mode<synchronous>, transform_indices = @transform_10, window_bounds = array<i64: 1, 2>}, {transform_indices = @transform_11, window_bounds = array<i64: 1, 1, 2>}]} {
    %c0 = arith.constant 0 : index
    %c0_0 = arith.constant 0 : index
    %0 = vector.load %arg2[%c0, %c0_0] : memref<32x102xbf16, #tpu.memory_space<vmem>>, vector<32x102xbf16>
    %c0_1 = arith.constant 0 : index
    %c0_2 = arith.constant 0 : index
    %1 = vector.load %arg3[%c0_1, %c0_2] : memref<32x1xf32, #tpu.memory_space<vmem>>, vector<32x1xf32>
    %c0_3 = arith.constant 0 : index
    %c0_4 = arith.constant 0 : index
    %2 = vector.load %arg4[%c0_3, %c0_4] : memref<32x480xbf16, #tpu.memory_space<vmem>>, vector<32x480xbf16>
    %c0_5 = arith.constant 0 : index
    %c0_6 = arith.constant 0 : index
    %3 = vector.load %arg5[%c0_5, %c0_6] : memref<32x1xf32, #tpu.memory_space<vmem>>, vector<32x1xf32>
    %c0_7 = arith.constant 0 : index
    %c0_8 = arith.constant 0 : index
    %4 = vector.load %arg6[%c0_7, %c0_8] : memref<768x201xbf16, #tpu.memory_space<vmem>>, vector<768x201xbf16>
    %c0_9 = arith.constant 0 : index
    %c0_10 = arith.constant 0 : index
    %5 = vector.load %arg7[%c0_9, %c0_10] : memref<187x23xbf16, #tpu.memory_space<vmem>>, vector<187x23xbf16>
    %c0_i32 = arith.constant 0 : i32
    %6 = arith.index_cast %c0_i32 : i32 to index
    %c0_11 = arith.constant 0 : index
    %c0_12 = arith.constant 0 : index
    %7 = vector.load %arg1[%6, %c0_11, %c0_12] : memref<1x102x768xbf16, #tpu.memory_space<vmem>>, vector<1x102x768xbf16>
    %8 = vector.shape_cast %7 : vector<1x102x768xbf16> to vector<102x768xbf16>
    %cst = arith.constant dense<0.000000e+00> : vector<32x768xf32>
    %9 = tpu.matmul %0, %8, %cst {dimension_numbers = #tpu.dot_dimension_numbers<[1], [0], [0], [1], [0, 0, 1, 1], [], []>} : vector<32x102xbf16>, vector<102x768xbf16>, vector<32x768xf32> -> vector<32x768xf32>
    %10 = vector.broadcast %1 : vector<32x1xf32> to vector<32x768xf32>
    %11 = arith.addf %9, %10 : vector<32x768xf32>
    %cst_13 = arith.constant 0.000000e+00 : f32
    %12 = vector.broadcast %cst_13 : f32 to vector<32x768xf32>
    %13 = arith.cmpf ogt, %11, %12 : vector<32x768xf32>
    %cst_14 = arith.constant 0.000000e+00 : f32
    %14 = vector.broadcast %cst_14 : f32 to vector<32x768xf32>
    %15 = arith.minimumf %11, %14 : vector<32x768xf32>
    %16 = math.exp %15 : vector<32x768xf32>
    %cst_15 = arith.constant 1.000000e+00 : f32
    %17 = vector.broadcast %cst_15 : f32 to vector<32x768xf32>
    %18 = arith.subf %16, %17 : vector<32x768xf32>
    %19 = arith.select %13, %11, %18 : vector<32x768xi1>, vector<32x768xf32>
    %20 = arith.truncf %19 : vector<32x768xf32> to vector<32x768xbf16>
    %cst_16 = arith.constant dense<0.000000e+00> : vector<32x201xf32>
    %21 = tpu.matmul %20, %4, %cst_16 {dimension_numbers = #tpu.dot_dimension_numbers<[1], [0], [0], [1], [0, 0, 1, 1], [], []>} : vector<32x768xbf16>, vector<768x201xbf16>, vector<32x201xf32> -> vector<32x201xf32>
    %22 = arith.truncf %21 : vector<32x201xf32> to vector<32x201xbf16>
    %23 = vector.extract_strided_slice %22 {offsets = [0, 0], sizes = [32, 187], strides = [1, 1]} : vector<32x201xbf16> to vector<32x187xbf16>
    %24 = vector.extract_strided_slice %22 {offsets = [0, 1], sizes = [32, 187], strides = [1, 1]} : vector<32x201xbf16> to vector<32x187xbf16>
    %25 = vector.extract_strided_slice %22 {offsets = [0, 2], sizes = [32, 187], strides = [1, 1]} : vector<32x201xbf16> to vector<32x187xbf16>
    %26 = vector.extract_strided_slice %22 {offsets = [0, 3], sizes = [32, 187], strides = [1, 1]} : vector<32x201xbf16> to vector<32x187xbf16>
    %27 = vector.extract_strided_slice %22 {offsets = [0, 4], sizes = [32, 187], strides = [1, 1]} : vector<32x201xbf16> to vector<32x187xbf16>
    %28 = vector.extract_strided_slice %22 {offsets = [0, 5], sizes = [32, 187], strides = [1, 1]} : vector<32x201xbf16> to vector<32x187xbf16>
    %29 = vector.extract_strided_slice %22 {offsets = [0, 6], sizes = [32, 187], strides = [1, 1]} : vector<32x201xbf16> to vector<32x187xbf16>
    %30 = vector.extract_strided_slice %22 {offsets = [0, 7], sizes = [32, 187], strides = [1, 1]} : vector<32x201xbf16> to vector<32x187xbf16>
    %31 = vector.extract_strided_slice %22 {offsets = [0, 8], sizes = [32, 187], strides = [1, 1]} : vector<32x201xbf16> to vector<32x187xbf16>
    %32 = vector.extract_strided_slice %22 {offsets = [0, 9], sizes = [32, 187], strides = [1, 1]} : vector<32x201xbf16> to vector<32x187xbf16>
    %33 = vector.extract_strided_slice %22 {offsets = [0, 10], sizes = [32, 187], strides = [1, 1]} : vector<32x201xbf16> to vector<32x187xbf16>
    %34 = vector.extract_strided_slice %22 {offsets = [0, 11], sizes = [32, 187], strides = [1, 1]} : vector<32x201xbf16> to vector<32x187xbf16>
    %35 = vector.extract_strided_slice %22 {offsets = [0, 12], sizes = [32, 187], strides = [1, 1]} : vector<32x201xbf16> to vector<32x187xbf16>
    %36 = vector.extract_strided_slice %22 {offsets = [0, 13], sizes = [32, 187], strides = [1, 1]} : vector<32x201xbf16> to vector<32x187xbf16>
    %37 = vector.extract_strided_slice %22 {offsets = [0, 14], sizes = [32, 187], strides = [1, 1]} : vector<32x201xbf16> to vector<32x187xbf16>
    %38 = tpu.concatenate %23, %24, %25, %26, %27, %28, %29, %30, %31, %32, %33, %34, %35, %36, %37 in 0 : vector<32x187xbf16>, vector<32x187xbf16>, vector<32x187xbf16>, vector<32x187xbf16>, vector<32x187xbf16>, vector<32x187xbf16>, vector<32x187xbf16>, vector<32x187xbf16>, vector<32x187xbf16>, vector<32x187xbf16>, vector<32x187xbf16>, vector<32x187xbf16>, vector<32x187xbf16>, vector<32x187xbf16>, vector<32x187xbf16> -> vector<480x187xbf16>
    %cst_17 = arith.constant dense<0.000000e+00> : vector<32x187xf32>
    %39 = tpu.matmul %2, %38, %cst_17 {dimension_numbers = #tpu.dot_dimension_numbers<[1], [0], [0], [1], [0, 0, 1, 1], [], []>} : vector<32x480xbf16>, vector<480x187xbf16>, vector<32x187xf32> -> vector<32x187xf32>
    %40 = vector.broadcast %3 : vector<32x1xf32> to vector<32x187xf32>
    %41 = arith.addf %39, %40 : vector<32x187xf32>
    %cst_18 = arith.constant 0.000000e+00 : f32
    %42 = vector.broadcast %cst_18 : f32 to vector<32x187xf32>
    %43 = arith.cmpf ogt, %41, %42 : vector<32x187xf32>
    %cst_19 = arith.constant 0.000000e+00 : f32
    %44 = vector.broadcast %cst_19 : f32 to vector<32x187xf32>
    %45 = arith.minimumf %41, %44 : vector<32x187xf32>
    %46 = math.exp %45 : vector<32x187xf32>
    %cst_20 = arith.constant 1.000000e+00 : f32
    %47 = vector.broadcast %cst_20 : f32 to vector<32x187xf32>
    %48 = arith.subf %46, %47 : vector<32x187xf32>
    %49 = arith.select %43, %41, %48 : vector<32x187xi1>, vector<32x187xf32>
    %50 = arith.truncf %49 : vector<32x187xf32> to vector<32x187xbf16>
    %cst_21 = arith.constant dense<0.000000e+00> : vector<32x23xf32>
    %51 = tpu.matmul %50, %5, %cst_21 {dimension_numbers = #tpu.dot_dimension_numbers<[1], [0], [0], [1], [0, 0, 1, 1], [], []>} : vector<32x187xbf16>, vector<187x23xbf16>, vector<32x23xf32> -> vector<32x23xf32>
    %c32_i32 = arith.constant 32 : i32
    %52 = arith.muli %c0_i32, %c32_i32 : i32
    %53 = tpu.assume_multiple %52, 32 : i32
    %54 = arith.index_cast %53 : i32 to index
    %c0_22 = arith.constant 0 : index
    %55 = vector.load %arg13[%54, %c0_22] : memref<32x23xf32, #tpu.memory_space<vmem>>, vector<32x23xf32>
    tpu.vector_store %arg13[%54, %c0_22], %51 {strides = array<i32>} : memref<32x23xf32, #tpu.memory_space<vmem>>, vector<32x23xf32>,
    %c1_i32 = arith.constant 1 : i32
    %c0_23 = arith.constant 0 : index
    %c0_24 = arith.constant 0 : index
    %56 = vector.load %arg13[%c0_23, %c0_24] : memref<32x23xf32, #tpu.memory_space<vmem>>, vector<32x23xf32>
    %c0_25 = arith.constant 0 : index
    %c0_26 = arith.constant 0 : index
    %c0_27 = arith.constant 0 : index
    %57 = vector.load %arg8[%c0_25, %c0_26, %c0_27] : memref<2x32x23xf32, #tpu.memory_space<vmem>>, vector<1x32x23xf32>
    %58 = vector.shape_cast %57 : vector<1x32x23xf32> to vector<32x23xf32>
    %59 = arith.mulf %56, %58 : vector<32x23xf32>
    %c1 = arith.constant 1 : index
    %c0_28 = arith.constant 0 : index
    %c0_29 = arith.constant 0 : index
    %60 = vector.load %arg8[%c1, %c0_28, %c0_29] : memref<2x32x23xf32, #tpu.memory_space<vmem>>, vector<1x32x23xf32>
    %61 = vector.shape_cast %60 : vector<1x32x23xf32> to vector<32x23xf32>
    %62 = arith.mulf %56, %61 : vector<32x23xf32>
    %63 = tpu.concatenate %59, %62 in 1 : vector<32x23xf32>, vector<32x23xf32> -> vector<32x46xf32>
    %c0_30 = arith.constant 0 : index
    %c0_31 = arith.constant 0 : index
    %64 = vector.load %arg9[%c0_30, %c0_31] : memref<46x2xf32, #tpu.memory_space<vmem>>, vector<46x2xf32>
    %cst_32 = arith.constant dense<0.000000e+00> : vector<32x2xf32>
    %65 = tpu.matmul %63, %64, %cst_32 {dimension_numbers = #tpu.dot_dimension_numbers<[1], [0], [0], [1], [0, 0, 1, 1], [], []>} : vector<32x46xf32>, vector<46x2xf32>, vector<32x2xf32> -> vector<32x2xf32>
    %c0_33 = arith.constant 0 : index
    %c0_34 = arith.constant 0 : index
    %66 = vector.load %arg10[%c0_33, %c0_34] : memref<1x32xf32, #tpu.memory_space<vmem>>, vector<1x32xf32>
    %cst_35 = arith.constant dense<0.000000e+00> : vector<1x2xf32>
    %67 = tpu.matmul %66, %65, %cst_35 {dimension_numbers = #tpu.dot_dimension_numbers<[1], [0], [0], [1], [0, 0, 1, 1], [], []>} : vector<1x32xf32>, vector<32x2xf32>, vector<1x2xf32> -> vector<1x2xf32>
    %c0_36 = arith.constant 0 : index
    %c0_37 = arith.constant 0 : index
    %68 = vector.load %arg11[%c0_36, %c0_37] : memref<1x2xf32, #tpu.memory_space<vmem>>, vector<1x2xf32>
    %69 = arith.addf %67, %68 : vector<1x2xf32>
    %c0_38 = arith.constant 0 : index
    %c0_39 = arith.constant 0 : index
    %c0_40 = arith.constant 0 : index
    %70 = vector.load %arg12[%c0_38, %c0_39, %c0_40] : memref<1x1x2xf32, #tpu.memory_space<vmem>>, vector<1x1x2xf32>
    %71 = vector.shape_cast %70 : vector<1x1x2xf32> to vector<1x2xf32>
    %72 = vector.shape_cast %69 : vector<1x2xf32> to vector<1x1x2xf32>
    tpu.vector_store %arg12[%c0_38, %c0_39, %c0_40], %72 {strides = array<i32>} : memref<1x1x2xf32, #tpu.memory_space<vmem>>, vector<1x1x2xf32>,
    return
  }
  func.func @transform_0(%arg0: i32) -> (i32, i32, i32) {
    %c0_i32 = arith.constant 0 : i32
    %c0_i32_0 = arith.constant 0 : i32
    %c0_i32_1 = arith.constant 0 : i32
    return %arg0, %c0_i32, %c0_i32_0 : i32, i32, i32
  }
  func.func @transform_1(%arg0: i32) -> (i32, i32) {
    %c0_i32 = arith.constant 0 : i32
    %c0_i32_0 = arith.constant 0 : i32
    %c0_i32_1 = arith.constant 0 : i32
    return %c0_i32, %c0_i32_0 : i32, i32
  }
  func.func @transform_2(%arg0: i32) -> (i32, i32) {
    %c0_i32 = arith.constant 0 : i32
    %c0_i32_0 = arith.constant 0 : i32
    %c0_i32_1 = arith.constant 0 : i32
    return %c0_i32, %c0_i32_0 : i32, i32
  }
  func.func @transform_3(%arg0: i32) -> (i32, i32) {
    %c0_i32 = arith.constant 0 : i32
    %c0_i32_0 = arith.constant 0 : i32
    %c0_i32_1 = arith.constant 0 : i32
    return %c0_i32, %c0_i32_0 : i32, i32
  }
  func.func @transform_4(%arg0: i32) -> (i32, i32) {
    %c0_i32 = arith.constant 0 : i32
    %c0_i32_0 = arith.constant 0 : i32
    %c0_i32_1 = arith.constant 0 : i32
    return %c0_i32, %c0_i32_0 : i32, i32
  }
  func.func @transform_5(%arg0: i32) -> (i32, i32) {
    %c0_i32 = arith.constant 0 : i32
    %c0_i32_0 = arith.constant 0 : i32
    %c0_i32_1 = arith.constant 0 : i32
    return %c0_i32, %c0_i32_0 : i32, i32
  }
  func.func @transform_6(%arg0: i32) -> (i32, i32) {
    %c0_i32 = arith.constant 0 : i32
    %c0_i32_0 = arith.constant 0 : i32
    %c0_i32_1 = arith.constant 0 : i32
    return %c0_i32, %c0_i32_0 : i32, i32
  }
  func.func @transform_7(%arg0: i32) -> (i32, i32, i32) {
    %c0_i32 = arith.constant 0 : i32
    %c0_i32_0 = arith.constant 0 : i32
    %c0_i32_1 = arith.constant 0 : i32
    %c0_i32_2 = arith.constant 0 : i32
    return %c0_i32, %c0_i32_0, %c0_i32_1 : i32, i32, i32
  }
  func.func @transform_8(%arg0: i32) -> (i32, i32) {
    %c0_i32 = arith.constant 0 : i32
    %c0_i32_0 = arith.constant 0 : i32
    %c0_i32_1 = arith.constant 0 : i32
    return %c0_i32, %c0_i32_0 : i32, i32
  }
  func.func @transform_9(%arg0: i32) -> (i32, i32) {
    %c0_i32 = arith.constant 0 : i32
    %c0_i32_0 = arith.constant 0 : i32
    %c0_i32_1 = arith.constant 0 : i32
    return %c0_i32, %c0_i32_0 : i32, i32
  }
  func.func @transform_10(%arg0: i32) -> (i32, i32) {
    %c0_i32 = arith.constant 0 : i32
    %c0_i32_0 = arith.constant 0 : i32
    %c0_i32_1 = arith.constant 0 : i32
    return %c0_i32, %c0_i32_0 : i32, i32
  }
  func.func @transform_11(%arg0: i32) -> (i32, i32, i32) {
    %c0_i32 = arith.constant 0 : i32
    %c0_i32_0 = arith.constant 0 : i32
    %c0_i32_1 = arith.constant 0 : i32
    return %arg0, %c0_i32, %c0_i32_0 : i32, i32, i32
  }
}

</mosaic_0001>

<llo_original>
// kernel: tpu_custom_call.1
$region0: #{tpu_custom_call.1}
  #allocation0 [shape = 'u32[]', space=smem, size = 0x4, offset = 0x4, fixed_abs, tag = 'smem constant byte address 0x4 - core index']
  #allocation1 [shape = 'u32[144,128]{1,0:T(1,128)}', space=vmem, size = 0x12000, scoped, tag = 'internal scratch']
  #allocation2 [shape = 'f32[32,23]{1,0:T(8,128)}', space=vmem, size = 0x4000, scoped, tag = 'scratch operand']
  %s0 = inlined_call_operand.vmem [shape: bf16[2,102,768], index: 0, kind: input, shape index: {}]
  %s1 = inlined_call_operand.vmem [shape: bf16[32,102], index: 1, kind: input, shape index: {}]
  %s2 = inlined_call_operand.vmem [shape: f32[32,1], index: 2, kind: input, shape index: {}]
  %s3 = inlined_call_operand.vmem [shape: bf16[32,480], index: 3, kind: input, shape index: {}]
  %s4 = inlined_call_operand.vmem [shape: f32[32,1], index: 4, kind: input, shape index: {}]
  %s5 = inlined_call_operand.vmem [shape: bf16[768,201], index: 5, kind: input, shape index: {}]
  %s6 = inlined_call_operand.vmem [shape: bf16[187,23], index: 6, kind: input, shape index: {}]
  %s7 = inlined_call_operand.vmem [shape: f32[2,32,23], index: 7, kind: input, shape index: {}]
  %s8 = inlined_call_operand.vmem [shape: f32[46,2], index: 8, kind: input, shape index: {}]
  %s9 = inlined_call_operand.vmem [shape: f32[1,32], index: 9, kind: input, shape index: {}]
  %s10 = inlined_call_operand.vmem [shape: f32[1,2], index: 10, kind: input, shape index: {}]
  %s11 = inlined_call_operand.hbm [shape: f32[2,1,2], index: 11, kind: output, shape index: {}]
  %s12 = sld [smem:[#allocation0]]
  $region77: #{tpu_custom_call.1} parent=0
    _
  %s14 = ssub.s32 1, %s12
  %s15 = scalar_select 0, %s14, %s12
  $region1: #{tpu_custom_call.1} parent=0
    #allocation3 [shape = 'u8[1024]{0}', space=vmem, size = 0x400, scoped, tag = 'output window, operand 0']
    #allocation4 [shape = 's32[2]{0}', space=sflag, size = 0x8, scoped, tag = 'scoped memory for tpu_custom_call.1']
    %16 = vsyncpa [#allocation4], 0
    %s17 = scalar_lea.sflag [#allocation4], 1
    %18 = vsyncpa %s17, 0
    loop: start=0, step=1, limit=4
    $region2: #{tpu_custom_call.1} parent=1 // loop_pre_header
      _
    $region3: #{tpu_custom_call.1} parent=1 // loop_header
      %s20 = sphi 0, %s24
      %p21 = scmp.ge.s32.totalorder %s20, 4
      %s30 = sphi 0, %s32
      %s33 = sphi 0, %s30
      %s34 = sphi 0, %s33
      %s50 = sphi 0, %s34
      %s54 = sphi 0, %s54
      %s56 = sphi 0, %s54
      %s57 = sphi 0, %s56
      %s71 = sphi 0, %s57
      %s75 = sphi 0, %s75
      %s77 = sphi 0, %s75
      %s78 = sphi 0, %s77
      %s92 = sphi 0, %s78
      %s96 = sphi 0, %s96
      %s98 = sphi 0, %s96
      %s99 = sphi 0, %s98
      %s113 = sphi 0, %s99
      %s117 = sphi 0, %s117
      %s119 = sphi 0, %s117
      %s120 = sphi 0, %s119
      %s134 = sphi 0, %s120
      %s138 = sphi 0, %s138
      %s140 = sphi 0, %s138
      %s141 = sphi 0, %s140
      %s155 = sphi 0, %s141
      %s159 = sphi 0, %s159
      %s161 = sphi 0, %s159
      %s162 = sphi 0, %s161
      %s176 = sphi 0, %s162
      %s180 = sphi 0, %s180
      %s182 = sphi 0, %s180
      %s183 = sphi 0, %s182
      %s197 = sphi 0, %s183
      %s201 = sphi 0, %s201
      %s203 = sphi 0, %s201
      %s204 = sphi 0, %s203
      %s218 = sphi 0, %s204
      %s222 = sphi 0, %s222
      %s224 = sphi 0, %s222
      %s225 = sphi 0, %s224
      %s239 = sphi 0, %s225
      %s243 = sphi 0, %s243
      %s245 = sphi 0, %s243
      %s246 = sphi 0, %s245
      %s260 = sphi 0, %s246
      %s266 = sphi 0, %s268
      %s269 = sphi 0, %s266
      %s270 = sphi 0, %s269
      %s286 = sphi 0, %s270
    $region4: #{tpu_custom_call.1} parent=1 // loop_header_branch
      %23 = sbr.rel (%p21) target = $region8
    $region5: #{tpu_custom_call.1} parent=1 // loop_body
      %s25 = ssub.s32 %s20, 1
      %s26 = ssub.s32 %s20, 2
      %s27 = sadd.s32 %s20, 1
      %s28 = ssub.s32 %s20, %s27
      %p29 = scmp.eq.s32.totalorder %s28, 0
      %s31 = sadd.s32 %s30, 1
      %s32 = scalar_select %p29, %s30, %s31
      %p35 = pneg %p29
      %p36 = scmp.eq.s32.totalorder %s20, 1
      %p37 = por %p35, %p36
      %p38 = scmp.ne.s32.totalorder %s30, %s33
      %p39 = scmp.eq.s32.totalorder %s20, 0
      %p40 = por %p38, %p39
      %p41 = scmp.ne.s32.totalorder %s30, %s33
      %p42 = scmp.eq.s32.totalorder %s25, 1
      %p43 = por %p41, %p42
      %p44 = scmp.ne.s32.totalorder %s33, %s34
      %p45 = scmp.eq.s32.totalorder %s25, 0
      %p46 = por %p44, %p45
      %p47 = scmp.ne.s32.totalorder %s33, %s34
      %p48 = scmp.eq.s32.totalorder %s26, 1
      %p49 = por %p47, %p48
      %p51 = scmp.ne.s32.totalorder %s34, %s50
      %p52 = scmp.eq.s32.totalorder %s26, 0
      %p53 = por %p51, %p52
      %s55 = sadd.s32 %s54, 1
      %p58 = scmp.eq.s32.totalorder %s20, 1
      %p59 = scmp.ne.s32.totalorder %s54, %s56
      %p60 = scmp.eq.s32.totalorder %s20, 0
      %p61 = por %p59, %p60
      %p62 = scmp.ne.s32.totalorder %s54, %s56
      %p63 = scmp.eq.s32.totalorder %s25, 1
      %p64 = por %p62, %p63
      %p65 = scmp.ne.s32.totalorder %s56, %s57
      %p66 = scmp.eq.s32.totalorder %s25, 0
      %p67 = por %p65, %p66
      %p68 = scmp.ne.s32.totalorder %s56, %s57
      %p69 = scmp.eq.s32.totalorder %s26, 1
      %p70 = por %p68, %p69
      %p72 = scmp.ne.s32.totalorder %s57, %s71
      %p73 = scmp.eq.s32.totalorder %s26, 0
      %p74 = por %p72, %p73
      %s76 = sadd.s32 %s75, 1
      %p79 = scmp.eq.s32.totalorder %s20, 1
      %p80 = scmp.ne.s32.totalorder %s75, %s77
      %p81 = scmp.eq.s32.totalorder %s20, 0
      %p82 = por %p80, %p81
      %p83 = scmp.ne.s32.totalorder %s75, %s77
      %p84 = scmp.eq.s32.totalorder %s25, 1
      %p85 = por %p83, %p84
      %p86 = scmp.ne.s32.totalorder %s77, %s78
      %p87 = scmp.eq.s32.totalorder %s25, 0
      %p88 = por %p86, %p87
      %p89 = scmp.ne.s32.totalorder %s77, %s78
      %p90 = scmp.eq.s32.totalorder %s26, 1
      %p91 = por %p89, %p90
      %p93 = scmp.ne.s32.totalorder %s78, %s92
      %p94 = scmp.eq.s32.totalorder %s26, 0
      %p95 = por %p93, %p94
      %s97 = sadd.s32 %s96, 1
      %p100 = scmp.eq.s32.totalorder %s20, 1
      %p101 = scmp.ne.s32.totalorder %s96, %s98
      %p102 = scmp.eq.s32.totalorder %s20, 0
      %p103 = por %p101, %p102
      %p104 = scmp.ne.s32.totalorder %s96, %s98
      %p105 = scmp.eq.s32.totalorder %s25, 1
      %p106 = por %p104, %p105
      %p107 = scmp.ne.s32.totalorder %s98, %s99
      %p108 = scmp.eq.s32.totalorder %s25, 0
      %p109 = por %p107, %p108
      %p110 = scmp.ne.s32.totalorder %s98, %s99
      %p111 = scmp.eq.s32.totalorder %s26, 1
      %p112 = por %p110, %p111
      %p114 = scmp.ne.s32.totalorder %s99, %s113
      %p115 = scmp.eq.s32.totalorder %s26, 0
      %p116 = por %p114, %p115
      %s118 = sadd.s32 %s117, 1
      %p121 = scmp.eq.s32.totalorder %s20, 1
      %p122 = scmp.ne.s32.totalorder %s117, %s119
      %p123 = scmp.eq.s32.totalorder %s20, 0
      %p124 = por %p122, %p123
      %p125 = scmp.ne.s32.totalorder %s117, %s119
      %p126 = scmp.eq.s32.totalorder %s25, 1
      %p127 = por %p125, %p126
      %p128 = scmp.ne.s32.totalorder %s119, %s120
      %p129 = scmp.eq.s32.totalorder %s25, 0
      %p130 = por %p128, %p129
      %p131 = scmp.ne.s32.totalorder %s119, %s120
      %p132 = scmp.eq.s32.totalorder %s26, 1
      %p133 = por %p131, %p132
      %p135 = scmp.ne.s32.totalorder %s120, %s134
      %p136 = scmp.eq.s32.totalorder %s26, 0
      %p137 = por %p135, %p136
      %s139 = sadd.s32 %s138, 1
      %p142 = scmp.eq.s32.totalorder %s20, 1
      %p143 = scmp.ne.s32.totalorder %s138, %s140
      %p144 = scmp.eq.s32.totalorder %s20, 0
      %p145 = por %p143, %p144
      %p146 = scmp.ne.s32.totalorder %s138, %s140
      %p147 = scmp.eq.s32.totalorder %s25, 1
      %p148 = por %p146, %p147
      %p149 = scmp.ne.s32.totalorder %s140, %s141
      %p150 = scmp.eq.s32.totalorder %s25, 0
      %p151 = por %p149, %p150
      %p152 = scmp.ne.s32.totalorder %s140, %s141
      %p153 = scmp.eq.s32.totalorder %s26, 1
      %p154 = por %p152, %p153
      %p156 = scmp.ne.s32.totalorder %s141, %s155
      %p157 = scmp.eq.s32.totalorder %s26, 0
      %p158 = por %p156, %p157
      %s160 = sadd.s32 %s159, 1
      %p163 = scmp.eq.s32.totalorder %s20, 1
      %p164 = scmp.ne.s32.totalorder %s159, %s161
      %p165 = scmp.eq.s32.totalorder %s20, 0
      %p166 = por %p164, %p165
      %p167 = scmp.ne.s32.totalorder %s159, %s161
      %p168 = scmp.eq.s32.totalorder %s25, 1
      %p169 = por %p167, %p168
      %p170 = scmp.ne.s32.totalorder %s161, %s162
      %p171 = scmp.eq.s32.totalorder %s25, 0
      %p172 = por %p170, %p171
      %p173 = scmp.ne.s32.totalorder %s161, %s162
      %p174 = scmp.eq.s32.totalorder %s26, 1
      %p175 = por %p173, %p174
      %p177 = scmp.ne.s32.totalorder %s162, %s176
      %p178 = scmp.eq.s32.totalorder %s26, 0
      %p179 = por %p177, %p178
      %s181 = sadd.s32 %s180, 1
      %p184 = scmp.eq.s32.totalorder %s20, 1
      %p185 = scmp.ne.s32.totalorder %s180, %s182
      %p186 = scmp.eq.s32.totalorder %s20, 0
      %p187 = por %p185, %p186
      %p188 = scmp.ne.s32.totalorder %s180, %s182
      %p189 = scmp.eq.s32.totalorder %s25, 1
      %p190 = por %p188, %p189
      %p191 = scmp.ne.s32.totalorder %s182, %s183
      %p192 = scmp.eq.s32.totalorder %s25, 0
      %p193 = por %p191, %p192
      %p194 = scmp.ne.s32.totalorder %s182, %s183
      %p195 = scmp.eq.s32.totalorder %s26, 1
      %p196 = por %p194, %p195
      %p198 = scmp.ne.s32.totalorder %s183, %s197
      %p199 = scmp.eq.s32.totalorder %s26, 0
      %p200 = por %p198, %p199
      %s202 = sadd.s32 %s201, 1
      %p205 = scmp.eq.s32.totalorder %s20, 1
      %p206 = scmp.ne.s32.totalorder %s201, %s203
      %p207 = scmp.eq.s32.totalorder %s20, 0
      %p208 = por %p206, %p207
      %p209 = scmp.ne.s32.totalorder %s201, %s203
      %p210 = scmp.eq.s32.totalorder %s25, 1
      %p211 = por %p209, %p210
      %p212 = scmp.ne.s32.totalorder %s203, %s204
      %p213 = scmp.eq.s32.totalorder %s25, 0
      %p214 = por %p212, %p213
      %p215 = scmp.ne.s32.totalorder %s203, %s204
      %p216 = scmp.eq.s32.totalorder %s26, 1
      %p217 = por %p215, %p216
      %p219 = scmp.ne.s32.totalorder %s204, %s218
      %p220 = scmp.eq.s32.totalorder %s26, 0
      %p221 = por %p219, %p220
      %s223 = sadd.s32 %s222, 1
      %p226 = scmp.eq.s32.totalorder %s20, 1
      %p227 = scmp.ne.s32.totalorder %s222, %s224
      %p228 = scmp.eq.s32.totalorder %s20, 0
      %p229 = por %p227, %p228
      %p230 = scmp.ne.s32.totalorder %s222, %s224
      %p231 = scmp.eq.s32.totalorder %s25, 1
      %p232 = por %p230, %p231
      %p233 = scmp.ne.s32.totalorder %s224, %s225
      %p234 = scmp.eq.s32.totalorder %s25, 0
      %p235 = por %p233, %p234
      %p236 = scmp.ne.s32.totalorder %s224, %s225
      %p237 = scmp.eq.s32.totalorder %s26, 1
      %p238 = por %p236, %p237
      %p240 = scmp.ne.s32.totalorder %s225, %s239
      %p241 = scmp.eq.s32.totalorder %s26, 0
      %p242 = por %p240, %p241
      %s244 = sadd.s32 %s243, 1
      %p247 = scmp.eq.s32.totalorder %s20, 1
      %p248 = scmp.ne.s32.totalorder %s243, %s245
      %p249 = scmp.eq.s32.totalorder %s20, 0
      %p250 = por %p248, %p249
      %p251 = scmp.ne.s32.totalorder %s243, %s245
      %p252 = scmp.eq.s32.totalorder %s25, 1
      %p253 = por %p251, %p252
      %p254 = scmp.ne.s32.totalorder %s245, %s246
      %p255 = scmp.eq.s32.totalorder %s25, 0
      %p256 = por %p254, %p255
      %p257 = scmp.ne.s32.totalorder %s245, %s246
      %p258 = scmp.eq.s32.totalorder %s26, 1
      %p259 = por %p257, %p258
      %p261 = scmp.ne.s32.totalorder %s246, %s260
      %p262 = scmp.eq.s32.totalorder %s26, 0
      %p263 = por %p261, %p262
      %s264 = ssub.s32 %s20, %s27
      %p265 = scmp.eq.s32.totalorder %s264, 0
      %s267 = sadd.s32 %s266, 1
      %s268 = scalar_select %p265, %s266, %s267
      %p271 = pneg %p265
      %p272 = scmp.eq.s32.totalorder %s20, 1
      %p273 = por %p271, %p272
      %p274 = scmp.ne.s32.totalorder %s266, %s269
      %p275 = scmp.eq.s32.totalorder %s20, 0
      %p276 = por %p274, %p275
      %p277 = scmp.ne.s32.totalorder %s266, %s269
      %p278 = scmp.eq.s32.totalorder %s25, 1
      %p279 = por %p277, %p278
      %p280 = scmp.ne.s32.totalorder %s269, %s270
      %p281 = scmp.eq.s32.totalorder %s25, 0
      %p282 = por %p280, %p281
      %p283 = scmp.ne.s32.totalorder %s269, %s270
      %p284 = scmp.eq.s32.totalorder %s26, 1
      %p285 = por %p283, %p284
      %p287 = scmp.ne.s32.totalorder %s270, %s286
      %p288 = scmp.eq.s32.totalorder %s26, 0
      %p289 = por %p287, %p288
      %p290 = scmp.le.s32.totalorder 1, %s20
      %p291 = scmp.lt.s32.totalorder %s20, 3
      %p292 = pnand %p290, %p291
      %p293 = pneg %p292
      // Predicated region
      $region9: #{tpu_custom_call.1} parent=5 // pred_check
        _
      $region10: #{tpu_custom_call.1} parent=5 // pred_check_branch
        %295 = sbr.rel (%p292) target = $region12
      $region11: #{tpu_custom_call.1} parent=5 // pred_region
        %s296 = ssub.s32 %s20, 1
        // Predicated region
        $region13: #{tpu_custom_call.1} parent=11 // pred_check
          %p297 = pneg %p67
        $region14: #{tpu_custom_call.1} parent=11 // pred_check_branch
          %299 = sbr.rel (%p297) target = $region16
        $region15: #{tpu_custom_call.1} parent=11 // pred_region
          _
        $region16: #{tpu_custom_call.1} parent=11 // pred_fallthru
          _
        // Predicated region
        $region17: #{tpu_custom_call.1} parent=11 // pred_check
          %p300 = pneg %p88
        $region18: #{tpu_custom_call.1} parent=11 // pred_check_branch
          %302 = sbr.rel (%p300) target = $region20
        $region19: #{tpu_custom_call.1} parent=11 // pred_region
          _
        $region20: #{tpu_custom_call.1} parent=11 // pred_fallthru
          _
        // Predicated region
        $region21: #{tpu_custom_call.1} parent=11 // pred_check
          %p303 = pneg %p109
        $region22: #{tpu_custom_call.1} parent=11 // pred_check_branch
          %305 = sbr.rel (%p303) target = $region24
        $region23: #{tpu_custom_call.1} parent=11 // pred_region
          _
        $region24: #{tpu_custom_call.1} parent=11 // pred_fallthru
          _
        // Predicated region
        $region25: #{tpu_custom_call.1} parent=11 // pred_check
          %p306 = pneg %p130
        $region26: #{tpu_custom_call.1} parent=11 // pred_check_branch
          %308 = sbr.rel (%p306) target = $region28
        $region27: #{tpu_custom_call.1} parent=11 // pred_region
          _
        $region28: #{tpu_custom_call.1} parent=11 // pred_fallthru
          _
        // Predicated region
        $region29: #{tpu_custom_call.1} parent=11 // pred_check
          %p309 = pneg %p151
        $region30: #{tpu_custom_call.1} parent=11 // pred_check_branch
          %311 = sbr.rel (%p309) target = $region32
        $region31: #{tpu_custom_call.1} parent=11 // pred_region
          _
        $region32: #{tpu_custom_call.1} parent=11 // pred_fallthru
          _
        // Predicated region
        $region33: #{tpu_custom_call.1} parent=11 // pred_check
          %p312 = pneg %p172
        $region34: #{tpu_custom_call.1} parent=11 // pred_check_branch
          %314 = sbr.rel (%p312) target = $region36
        $region35: #{tpu_custom_call.1} parent=11 // pred_region
          _
        $region36: #{tpu_custom_call.1} parent=11 // pred_fallthru
          _
        // Predicated region
        $region37: #{tpu_custom_call.1} parent=11 // pred_check
          %p315 = pneg %p193
        $region38: #{tpu_custom_call.1} parent=11 // pred_check_branch
          %317 = sbr.rel (%p315) target = $region40
        $region39: #{tpu_custom_call.1} parent=11 // pred_region
          _
        $region40: #{tpu_custom_call.1} parent=11 // pred_fallthru
          _
        // Predicated region
        $region41: #{tpu_custom_call.1} parent=11 // pred_check
          %p318 = pneg %p214
        $region42: #{tpu_custom_call.1} parent=11 // pred_check_branch
          %320 = sbr.rel (%p318) target = $region44
        $region43: #{tpu_custom_call.1} parent=11 // pred_region
          _
        $region44: #{tpu_custom_call.1} parent=11 // pred_fallthru
          _
        // Predicated region
        $region45: #{tpu_custom_call.1} parent=11 // pred_check
          %p321 = pneg %p235
        $region46: #{tpu_custom_call.1} parent=11 // pred_check_branch
          %323 = sbr.rel (%p321) target = $region48
        $region47: #{tpu_custom_call.1} parent=11 // pred_region
          _
        $region48: #{tpu_custom_call.1} parent=11 // pred_fallthru
          _
        // Predicated region
        $region49: #{tpu_custom_call.1} parent=11 // pred_check
          %p324 = pneg %p256
        $region50: #{tpu_custom_call.1} parent=11 // pred_check_branch
          %326 = sbr.rel (%p324) target = $region52
        $region51: #{tpu_custom_call.1} parent=11 // pred_region
          _
        $region52: #{tpu_custom_call.1} parent=11 // pred_fallthru
          _
      $region12: #{tpu_custom_call.1} parent=5 // pred_fallthru
        _
      %p327 = scmp.lt.s32.totalorder %s20, 2
      // Predicated region
      $region53: #{tpu_custom_call.1} parent=5 // pred_check
        %p328 = pneg %p327
      $region54: #{tpu_custom_call.1} parent=5 // pred_check_branch
        %330 = sbr.rel (%p328) target = $region56
      $region55: #{tpu_custom_call.1} parent=5 // pred_region
        // Predicated region
        $region57: #{tpu_custom_call.1} parent=55 // pred_check
          %p331 = pneg %p40
        $region58: #{tpu_custom_call.1} parent=55 // pred_check_branch
          %333 = sbr.rel (%p331) target = $region60
        $region59: #{tpu_custom_call.1} parent=55 // pred_region
          %p334 = scmp.lt.s32.totalorder %s20, 1
          %s335 = scalar_select %p334, %s20, 1
          %s336 = smul.addr %s335, 78
          %s337 = smul.addr %s336, 4
          %s338 = scalar_lea.vmem %s0, %s337
        $region60: #{tpu_custom_call.1} parent=55 // pred_fallthru
          _
      $region56: #{tpu_custom_call.1} parent=5 // pred_fallthru
        _
      %p339 = scmp.le.s32.totalorder 1, %s20
      %p340 = scmp.lt.s32.totalorder %s20, 3
      %p341 = pnand %p339, %p340
      %p342 = pneg %p341
      // Predicated region
      $region61: #{tpu_custom_call.1} parent=5 // pred_check
        _
      $region62: #{tpu_custom_call.1} parent=5 // pred_check_branch
        %344 = sbr.rel (%p341) target = $region64
      $region63: #{tpu_custom_call.1} parent=5 // pred_region
        %s345 = ssub.s32 %s20, 1
        %p346 = scmp.lt.s32.totalorder %s25, 1
        %s347 = scalar_select %p346, %s25, 1
        %s348 = smul.addr %s347, 78
        %s349 = smul.addr %s348, 4
        %s350 = scalar_lea.vmem %s0, %s349
        %p351 = pneg %p46
        %p352 = pneg %p43
        %p353 = pneg %p67
        %p354 = pneg %p64
        %p355 = pneg %p88
        %p356 = pneg %p85
        %p357 = pneg %p109
        %p358 = pneg %p106
        %p359 = pneg %p130
        %p360 = pneg %p127
        %p361 = pneg %p151
        %p362 = pneg %p148
        %p363 = pneg %p172
        %p364 = pneg %p169
        %p365 = pneg %p193
        %p366 = pneg %p190
        %p367 = pneg %p214
        %p368 = pneg %p211
        %p369 = pneg %p235
        %p370 = pneg %p232
        %p371 = pneg %p256
        %p372 = pneg %p253
        %p373 = pneg %p282
        %p374 = pneg %p279
        %s375 = sand.u32 %s269, 1
        %s376 = scalar_lea.sflag [#allocation4], %s375
        %s377 = sand.u32 %s269, 1
        %s378 = scalar_lea.vmem [#allocation3], %s377
        %p379 = scmp.lt.s32.totalorder %s25, 1
        %s380 = scalar_select %p379, %s25, 1
        %s381 = smul.addr %s380, 78
        %s382 = smul.addr %s381, 4
        %s383 = scalar_lea.vmem %s0, %s382
        %v385 = vld [vmem:[%s1] sm:$0xf]
        %v386 = vld [vmem:[%s1 + $0x4] sm:$0xf]
        %v387 = vld [vmem:[%s1 + $0x8] sm:$0xf]
        %v388 = vld [vmem:[%s1 + $0xc] sm:$0xf]
        %v389 = vld [vmem:[%s2] sm:$0xff]
        %v390 = vld [vmem:[%s2 + $0x8] sm:$0xff]
        %v391 = vld [vmem:[%s2 + $0x10] sm:$0xff]
        %v392 = vld [vmem:[%s2 + $0x18] sm:$0xff]
        %v393 = vld [vmem:[%s3] sm:$0xff]
        %v394 = vld [vmem:[%s3 + $0x8] sm:$0xff]
        %v395 = vld [vmem:[%s3 + $0x10] sm:$0xff]
        %v396 = vld [vmem:[%s3 + $0x18] sm:$0xff]
        %v397 = vld [vmem:[%s3 + $0x20] sm:$0xff]
        %v398 = vld [vmem:[%s3 + $0x28] sm:$0xff]
        %v399 = vld [vmem:[%s3 + $0x30] sm:$0xff]
        %v400 = vld [vmem:[%s3 + $0x38] sm:$0xff]
        %v401 = vld [vmem:[%s4] sm:$0xff]
        %v402 = vld [vmem:[%s4 + $0x8] sm:$0xff]
        %v403 = vld [vmem:[%s4 + $0x10] sm:$0xff]
        %v404 = vld [vmem:[%s4 + $0x18] sm:$0xff]
        %v405 = vld [vmem:[%s5] sm:$0xff]
        %v406 = vld [vmem:[%s5 + $0x8] sm:$0xff]
        %v407 = vld [vmem:[%s5 + $0x10] sm:$0xff]
        %v408 = vld [vmem:[%s5 + $0x18] sm:$0xff]
        %v409 = vld [vmem:[%s5 + $0x20] sm:$0xff]
        %v410 = vld [vmem:[%s5 + $0x28] sm:$0xff]
        %v411 = vld [vmem:[%s5 + $0x30] sm:$0xff]
        %v412 = vld [vmem:[%s5 + $0x38] sm:$0xff]
        %v413 = vld [vmem:[%s5 + $0x40] sm:$0xff]
        %v414 = vld [vmem:[%s5 + $0x48] sm:$0xff]
        %v415 = vld [vmem:[%s5 + $0x50] sm:$0xff]
        %v416 = vld [vmem:[%s5 + $0x58] sm:$0xff]
        %v417 = vld [vmem:[%s5 + $0x60] sm:$0xff]
        %v418 = vld [vmem:[%s5 + $0x68] sm:$0xff]
        %v419 = vld [vmem:[%s5 + $0x70] sm:$0xff]
        %v420 = vld [vmem:[%s5 + $0x78] sm:$0xff]
        %v421 = vld [vmem:[%s5 + $0x80] sm:$0xff]
        %v422 = vld [vmem:[%s5 + $0x88] sm:$0xff]
        %v423 = vld [vmem:[%s5 + $0x90] sm:$0xff]
        %v424 = vld [vmem:[%s5 + $0x98] sm:$0xff]
        %v425 = vld [vmem:[%s5 + $0xa0] sm:$0xff]
        %v426 = vld [vmem:[%s5 + $0xa8] sm:$0xff]
        %v427 = vld [vmem:[%s5 + $0xb0] sm:$0xff]
        %v428 = vld [vmem:[%s5 + $0xb8] sm:$0xff]
        %v429 = vld [vmem:[%s5 + $0xc0] sm:$0xff]
        %v430 = vld [vmem:[%s5 + $0xc8] sm:$0xff]
        %v431 = vld [vmem:[%s5 + $0xd0] sm:$0xff]
        %v432 = vld [vmem:[%s5 + $0xd8] sm:$0xff]
        %v433 = vld [vmem:[%s5 + $0xe0] sm:$0xff]
        %v434 = vld [vmem:[%s5 + $0xe8] sm:$0xff]
        %v435 = vld [vmem:[%s5 + $0xf0] sm:$0xff]
        %v436 = vld [vmem:[%s5 + $0xf8] sm:$0xff]
        %v437 = vld [vmem:[%s5 + $0x100] sm:$0xff]
        %v438 = vld [vmem:[%s5 + $0x108] sm:$0xff]
        %v439 = vld [vmem:[%s5 + $0x110] sm:$0xff]
        %v440 = vld [vmem:[%s5 + $0x118] sm:$0xff]
        %v441 = vld [vmem:[%s5 + $0x120] sm:$0xff]
        %v442 = vld [vmem:[%s5 + $0x128] sm:$0xff]
        %v443 = vld [vmem:[%s5 + $0x130] sm:$0xff]
        %v444 = vld [vmem:[%s5 + $0x138] sm:$0xff]
        %v445 = vld [vmem:[%s5 + $0x140] sm:$0xff]
        %v446 = vld [vmem:[%s5 + $0x148] sm:$0xff]
        %v447 = vld [vmem:[%s5 + $0x150] sm:$0xff]
        %v448 = vld [vmem:[%s5 + $0x158] sm:$0xff]
        %v449 = vld [vmem:[%s5 + $0x160] sm:$0xff]
        %v450 = vld [vmem:[%s5 + $0x168] sm:$0xff]
        %v451 = vld [vmem:[%s5 + $0x170] sm:$0xff]
        %v452 = vld [vmem:[%s5 + $0x178] sm:$0xff]
        %v453 = vld [vmem:[%s5 + $0x180] sm:$0xff]
        %v454 = vld [vmem:[%s5 + $0x188] sm:$0xff]
        %v455 = vld [vmem:[%s5 + $0x190] sm:$0xff]
        %v456 = vld [vmem:[%s5 + $0x198] sm:$0xff]
        %v457 = vld [vmem:[%s5 + $0x1a0] sm:$0xff]
        %v458 = vld [vmem:[%s5 + $0x1a8] sm:$0xff]
        %v459 = vld [vmem:[%s5 + $0x1b0] sm:$0xff]
        %v460 = vld [vmem:[%s5 + $0x1b8] sm:$0xff]
        %v461 = vld [vmem:[%s5 + $0x1c0] sm:$0xff]
        %v462 = vld [vmem:[%s5 + $0x1c8] sm:$0xff]
        %v463 = vld [vmem:[%s5 + $0x1d0] sm:$0xff]
        %v464 = vld [vmem:[%s5 + $0x1d8] sm:$0xff]
        %v465 = vld [vmem:[%s5 + $0x1e0] sm:$0xff]
        %v466 = vld [vmem:[%s5 + $0x1e8] sm:$0xff]
        %v467 = vld [vmem:[%s5 + $0x1f0] sm:$0xff]
        %v468 = vld [vmem:[%s5 + $0x1f8] sm:$0xff]
        %v469 = vld [vmem:[%s5 + $0x200] sm:$0xff]
        %v470 = vld [vmem:[%s5 + $0x208] sm:$0xff]
        %v471 = vld [vmem:[%s5 + $0x210] sm:$0xff]
        %v472 = vld [vmem:[%s5 + $0x218] sm:$0xff]
        %v473 = vld [vmem:[%s5 + $0x220] sm:$0xff]
        %v474 = vld [vmem:[%s5 + $0x228] sm:$0xff]
        %v475 = vld [vmem:[%s5 + $0x230] sm:$0xff]
        %v476 = vld [vmem:[%s5 + $0x238] sm:$0xff]
        %v477 = vld [vmem:[%s5 + $0x240] sm:$0xff]
        %v478 = vld [vmem:[%s5 + $0x248] sm:$0xff]
        %v479 = vld [vmem:[%s5 + $0x250] sm:$0xff]
        %v480 = vld [vmem:[%s5 + $0x258] sm:$0xff]
        %v481 = vld [vmem:[%s5 + $0x260] sm:$0xff]
        %v482 = vld [vmem:[%s5 + $0x268] sm:$0xff]
        %v483 = vld [vmem:[%s5 + $0x270] sm:$0xff]
        %v484 = vld [vmem:[%s5 + $0x278] sm:$0xff]
        %v485 = vld [vmem:[%s5 + $0x280] sm:$0xff]
        %v486 = vld [vmem:[%s5 + $0x288] sm:$0xff]
        %v487 = vld [vmem:[%s5 + $0x290] sm:$0xff]
        %v488 = vld [vmem:[%s5 + $0x298] sm:$0xff]
        %v489 = vld [vmem:[%s5 + $0x2a0] sm:$0xff]
        %v490 = vld [vmem:[%s5 + $0x2a8] sm:$0xff]
        %v491 = vld [vmem:[%s5 + $0x2b0] sm:$0xff]
        %v492 = vld [vmem:[%s5 + $0x2b8] sm:$0xff]
        %v493 = vld [vmem:[%s5 + $0x2c0] sm:$0xff]
        %v494 = vld [vmem:[%s5 + $0x2c8] sm:$0xff]
        %v495 = vld [vmem:[%s5 + $0x2d0] sm:$0xff]
        %v496 = vld [vmem:[%s5 + $0x2d8] sm:$0xff]
        %v497 = vld [vmem:[%s5 + $0x2e0] sm:$0xff]
        %v498 = vld [vmem:[%s5 + $0x2e8] sm:$0xff]
        %v499 = vld [vmem:[%s5 + $0x2f0] sm:$0xff]
        %v500 = vld [vmem:[%s5 + $0x2f8] sm:$0xff]
        %v501 = vld [vmem:[%s6] sm:$0xf]
        %v502 = vld [vmem:[%s6 + $0x4] sm:$0xf]
        %v503 = vld [vmem:[%s6 + $0x8] sm:$0xf]
        %v504 = vld [vmem:[%s6 + $0xc] sm:$0xf]
        %v505 = vld [vmem:[%s6 + $0x10] sm:$0xf]
        %v506 = vld [vmem:[%s6 + $0x14] sm:$0xf]
        %v507 = vld [vmem:[%s6 + $0x18] sm:$0xf]
        %v508 = vld [vmem:[%s6 + $0x1c] sm:$0xf]
        %v509 = vld [vmem:[%s6 + $0x20] sm:$0xf]
        %v510 = vld [vmem:[%s6 + $0x24] sm:$0xf]
        %v511 = vld [vmem:[%s6 + $0x28] sm:$0xf]
        %v512 = vld [vmem:[%s6 + $0x2c] sm:$0xf]
        %v513 = vld [vmem:[%s6 + $0x30] sm:$0xf]
        %v514 = vld [vmem:[%s6 + $0x34] sm:$0xf]
        %v515 = vld [vmem:[%s6 + $0x38] sm:$0xf]
        %v516 = vld [vmem:[%s6 + $0x3c] sm:$0xf]
        %v517 = vld [vmem:[%s6 + $0x40] sm:$0xf]
        %v518 = vld [vmem:[%s6 + $0x44] sm:$0xf]
        %v519 = vld [vmem:[%s6 + $0x48] sm:$0xf]
        %v520 = vld [vmem:[%s6 + $0x4c] sm:$0xf]
        %v521 = vld [vmem:[%s6 + $0x50] sm:$0xf]
        %v522 = vld [vmem:[%s6 + $0x54] sm:$0xf]
        %v523 = vld [vmem:[%s6 + $0x58] sm:$0xf]
        %v524 = vld [vmem:[%s6 + $0x5c] sm:$0x3]
        %v525 = vld [vmem:[%s383] sm:$0xff]
        %v526 = vld [vmem:[%s383 + $0x8] sm:$0xff]
        %v527 = vld [vmem:[%s383 + $0x10] sm:$0xff]
        %v528 = vld [vmem:[%s383 + $0x18] sm:$0xff]
        %v529 = vld [vmem:[%s383 + $0x20] sm:$0xff]
        %v530 = vld [vmem:[%s383 + $0x28] sm:$0xff]
        %v531 = vld [vmem:[%s383 + $0x30] sm:$0xff]
        %v532 = vld [vmem:[%s383 + $0x38] sm:$0xff]
        %v533 = vld [vmem:[%s383 + $0x40] sm:$0xff]
        %v534 = vld [vmem:[%s383 + $0x48] sm:$0xff]
        %v535 = vld [vmem:[%s383 + $0x50] sm:$0xff]
        %v536 = vld [vmem:[%s383 + $0x58] sm:$0xff]
        %v537 = vld [vmem:[%s383 + $0x60] sm:$0xff]
        %v538 = vld [vmem:[%s383 + $0x68] sm:$0xff]
        %v539 = vld [vmem:[%s383 + $0x70] sm:$0xff]
        %v540 = vld [vmem:[%s383 + $0x78] sm:$0xff]
        %v541 = vld [vmem:[%s383 + $0x80] sm:$0xff]
        %v542 = vld [vmem:[%s383 + $0x88] sm:$0xff]
        %v543 = vld [vmem:[%s383 + $0x90] sm:$0xff]
        %v544 = vld [vmem:[%s383 + $0x98] sm:$0xff]
        %v545 = vld [vmem:[%s383 + $0xa0] sm:$0xff]
        %v546 = vld [vmem:[%s383 + $0xa8] sm:$0xff]
        %v547 = vld [vmem:[%s383 + $0xb0] sm:$0xff]
        %v548 = vld [vmem:[%s383 + $0xb8] sm:$0xff]
        %v549 = vld [vmem:[%s383 + $0xc0] sm:$0xff]
        %v550 = vld [vmem:[%s383 + $0xc8] sm:$0xff]
        %v551 = vld [vmem:[%s383 + $0xd0] sm:$0xff]
        %v552 = vld [vmem:[%s383 + $0xd8] sm:$0xff]
        %v553 = vld [vmem:[%s383 + $0xe0] sm:$0xff]
        %v554 = vld [vmem:[%s383 + $0xe8] sm:$0xff]
        %v555 = vld [vmem:[%s383 + $0xf0] sm:$0xff]
        %v556 = vld [vmem:[%s383 + $0xf8] sm:$0xff]
        %v557 = vld [vmem:[%s383 + $0x100] sm:$0xff]
        %v558 = vld [vmem:[%s383 + $0x108] sm:$0xff]
        %v559 = vld [vmem:[%s383 + $0x110] sm:$0xff]
        %v560 = vld [vmem:[%s383 + $0x118] sm:$0xff]
        %v561 = vld [vmem:[%s383 + $0x120] sm:$0x77]
        %v562 = vld [vmem:[%s383 + $0x128] sm:$0x77]
        %v563 = vld [vmem:[%s383 + $0x130] sm:$0x77]
        %565 = vset.pattern.permute.xlu0 0
        %566 = vperm.xlu0 %565, %v389
        %v567 = vpop.permute.xlu0 %566
        %570 = vset.pattern.permute.xlu0 0
        %571 = vperm.xlu0 %570, %v390
        %v572 = vpop.permute.xlu0 %571
        %575 = vset.pattern.permute.xlu0 0
        %576 = vperm.xlu0 %575, %v391
        %v577 = vpop.permute.xlu0 %576
        %580 = vset.pattern.permute.xlu0 0
        %581 = vperm.xlu0 %580, %v392
        %v582 = vpop.permute.xlu0 %581
        %v588 = vunpack.c.l.b16 %v385
        %v589 = vunpack.c.l.b16 %v386
        %v590 = vunpack.c.l.b16 %v387
        %v591 = vunpack.c.l.b16 %v388
        %v592 = vpack.c.b16 %v589, %v588
        %v593 = vpack.c.b16 %v591, %v590
        %v633 = vunpack.c.l.b16 %v525
        %v634 = vunpack.c.h.b16 %v525
        %v635 = vunpack.c.l.b16 %v526
        %v636 = vunpack.c.h.b16 %v526
        %v637 = vunpack.c.l.b16 %v527
        %v638 = vunpack.c.h.b16 %v527
        %v639 = vunpack.c.l.b16 %v528
        %v640 = vunpack.c.h.b16 %v528
        %v641 = vunpack.c.l.b16 %v529
        %v642 = vunpack.c.h.b16 %v529
        %v643 = vunpack.c.l.b16 %v530
        %v644 = vunpack.c.h.b16 %v530
        %v645 = vunpack.c.l.b16 %v531
        %v646 = vunpack.c.h.b16 %v531
        %v647 = vunpack.c.l.b16 %v532
        %v648 = vunpack.c.h.b16 %v532
        %v649 = vunpack.c.l.b16 %v533
        %v650 = vunpack.c.h.b16 %v533
        %v651 = vunpack.c.l.b16 %v534
        %v652 = vunpack.c.h.b16 %v534
        %v653 = vunpack.c.l.b16 %v535
        %v654 = vunpack.c.h.b16 %v535
        %v655 = vunpack.c.l.b16 %v536
        %v656 = vunpack.c.h.b16 %v536
        %v657 = vunpack.c.l.b16 %v537
        %v658 = vunpack.c.h.b16 %v537
        %v659 = vunpack.c.l.b16 %v538
        %v660 = vunpack.c.h.b16 %v538
        %v661 = vunpack.c.l.b16 %v539
        %v662 = vunpack.c.h.b16 %v539
        %v663 = vunpack.c.l.b16 %v540
        %v664 = vunpack.c.h.b16 %v540
        %v665 = vunpack.c.l.b16 %v541
        %v666 = vunpack.c.h.b16 %v541
        %v667 = vunpack.c.l.b16 %v542
        %v668 = vunpack.c.h.b16 %v542
        %v669 = vunpack.c.l.b16 %v543
        %v670 = vunpack.c.h.b16 %v543
        %v671 = vunpack.c.l.b16 %v544
        %v672 = vunpack.c.h.b16 %v544
        %v673 = vunpack.c.l.b16 %v545
        %v674 = vunpack.c.h.b16 %v545
        %v675 = vunpack.c.l.b16 %v546
        %v676 = vunpack.c.h.b16 %v546
        %v677 = vunpack.c.l.b16 %v547
        %v678 = vunpack.c.h.b16 %v547
        %v679 = vunpack.c.l.b16 %v548
        %v680 = vunpack.c.h.b16 %v548
        %v681 = vunpack.c.l.b16 %v549
        %v682 = vunpack.c.h.b16 %v549
        %v683 = vunpack.c.l.b16 %v550
        %v684 = vunpack.c.h.b16 %v550
        %v685 = vunpack.c.l.b16 %v551
        %v686 = vunpack.c.h.b16 %v551
        %v687 = vunpack.c.l.b16 %v552
        %v688 = vunpack.c.h.b16 %v552
        %v689 = vunpack.c.l.b16 %v553
        %v690 = vunpack.c.h.b16 %v553
        %v691 = vunpack.c.l.b16 %v554
        %v692 = vunpack.c.h.b16 %v554
        %v693 = vunpack.c.l.b16 %v555
        %v694 = vunpack.c.h.b16 %v555
        %v695 = vunpack.c.l.b16 %v556
        %v696 = vunpack.c.h.b16 %v556
        %v697 = vunpack.c.l.b16 %v557
        %v698 = vunpack.c.h.b16 %v557
        %v699 = vunpack.c.l.b16 %v558
        %v700 = vunpack.c.h.b16 %v558
        %v701 = vunpack.c.l.b16 %v559
        %v702 = vunpack.c.h.b16 %v559
        %v703 = vunpack.c.l.b16 %v560
        %v704 = vunpack.c.h.b16 %v560
        %v705 = vunpack.c.l.b16 %v561
        %v706 = vunpack.c.h.b16 %v561
        %v707 = vunpack.c.l.b16 %v562
        %v708 = vunpack.c.h.b16 %v562
        %v709 = vunpack.c.l.b16 %v563
        %v710 = vunpack.c.h.b16 %v563
        %v711 = vpack.c.b16 %v639, %v633
        %v712 = vpack.c.b16 %v640, %v634
        %v713 = vpack.c.b16 %v641, %v635
        %v714 = vpack.c.b16 %v642, %v636
        %v715 = vpack.c.b16 %v643, %v637
        %v716 = vpack.c.b16 %v644, %v638
        %v717 = vpack.c.b16 %v651, %v645
        %v718 = vpack.c.b16 %v652, %v646
        %v719 = vpack.c.b16 %v653, %v647
        %v720 = vpack.c.b16 %v654, %v648
        %v721 = vpack.c.b16 %v655, %v649
        %v722 = vpack.c.b16 %v656, %v650
        %v723 = vpack.c.b16 %v663, %v657
        %v724 = vpack.c.b16 %v664, %v658
        %v725 = vpack.c.b16 %v665, %v659
        %v726 = vpack.c.b16 %v666, %v660
        %v727 = vpack.c.b16 %v667, %v661
        %v728 = vpack.c.b16 %v668, %v662
        %v729 = vpack.c.b16 %v675, %v669
        %v730 = vpack.c.b16 %v676, %v670
        %v731 = vpack.c.b16 %v677, %v671
        %v732 = vpack.c.b16 %v678, %v672
        %v733 = vpack.c.b16 %v679, %v673
        %v734 = vpack.c.b16 %v680, %v674
        %v735 = vpack.c.b16 %v687, %v681
        %v736 = vpack.c.b16 %v688, %v682
        %v737 = vpack.c.b16 %v689, %v683
        %v738 = vpack.c.b16 %v690, %v684
        %v739 = vpack.c.b16 %v691, %v685
        %v740 = vpack.c.b16 %v692, %v686
        %v741 = vpack.c.b16 %v699, %v693
        %v742 = vpack.c.b16 %v700, %v694
        %v743 = vpack.c.b16 %v701, %v695
        %v744 = vpack.c.b16 %v702, %v696
        %v745 = vpack.c.b16 %v703, %v697
        %v746 = vpack.c.b16 %v704, %v698
        %v747 = vpack.c.b16 %v705, %v705
        %v748 = vpack.c.b16 %v706, %v706
        %v749 = vpack.c.b16 %v707, %v707
        %v750 = vpack.c.b16 %v708, %v708
        %v751 = vpack.c.b16 %v709, %v709
        %v752 = vpack.c.b16 %v710, %v710
        %vm789 = vcmask 834560
        %v791 = vsel %vm789, %v592, 0
        %v794 = vsel %vm789, %v593, 0
        %vm796 = vcmask 1042432
        %v798 = vsel %vm796, %v747, 0
        %v801 = vsel %vm796, %v748, 0
        %v804 = vsel %vm796, %v749, 0
        %v807 = vsel %vm796, %v750, 0
        %v810 = vsel %vm796, %v751, 0
        %v813 = vsel %vm796, %v752, 0
        %815 = vmatprep.subr.bf16.mxu0 %v712
        %816 = vmatpush1.bf16.msra.mxu0 %v711
        %817 = vmatprep.subr.bf16.mxu0 %v718
        %818 = vmatpush1.bf16.msra.mxu0 %v717
        %819 = vmatprep.subr.bf16.mxu0 %v724
        %820 = vmatpush1.bf16.msra.mxu0 %v723
        %821 = vmatprep.subr.bf16.mxu0 %v730
        %822 = vmatpush1.bf16.msra.mxu0 %v729
        %823 = vmatprep.subr.bf16.mxu0 %v736
        %824 = vmatpush1.bf16.msra.mxu0 %v735
        %825 = vmatprep.subr.bf16.mxu0 %v742
        %826 = vmatpush1.bf16.msra.mxu0 %v741
        %827 = vmatprep.subr.bf16.mxu0 %v801
        %828 = vmatpush1.bf16.msra.mxu0 %v798
        %829 = vmatprep.subr.bf16.mxu0 0
        %830 = vmatpush1.bf16.msra.mxu0 0
        %831 = vmatprep.subr.bf16.mxu0 0
        %832 = vmatpush1.bf16.msra.mxu0 0
        %833 = vmatprep.subr.bf16.mxu0 0
        %834 = vmatpush1.bf16.msra.mxu0 0
        %835 = vmatprep.subr.bf16.mxu0 0
        %836 = vmatpush1.bf16.msra.mxu0 0
        %837 = vmatprep.subr.bf16.mxu0 0
        %838 = vmatpush1.bf16.msra.mxu0 0
        %839 = vmatprep.subr.bf16.mxu0 0
        %840 = vmatpush1.bf16.msra.mxu0 0
        %841 = vmatprep.subr.bf16.mxu0 0
        %842 = vmatpush1.bf16.msra.mxu0 0
        %843 = vmatprep.subr.bf16.mxu0 0
        %844 = vmatpush1.bf16.msra.mxu0 0
        %845 = vmatprep.subr.bf16.mxu0 0
        %846 = vmatpush1.bf16.msra.mxu0 0
        %847 = vmatprep.mubr.bf16.mxu0 0
        %848 = vmatmul.mubr.bf16.gmra.mrb[0].mxu0 %v791
        %v849 = vpop.f32.mrb[0].mxu0
        %v850 = vadd.f32 %v567, %v849
        %v851 = vpop.f32.mrb[0].mxu0
        %v852 = vadd.f32 %v567, %v851
        %v853 = vpop.f32.mrb[0].mxu0
        %v854 = vadd.f32 %v572, %v853
        %v855 = vpop.f32.mrb[0].mxu0
        %v856 = vadd.f32 %v572, %v855
        %857 = vmatprep.mubr.bf16.mxu0 0
        %858 = vmatmul.mubr.bf16.gmra.mrb[0].mxu0 %v794
        %v859 = vpop.f32.mrb[0].mxu0
        %v860 = vadd.f32 %v577, %v859
        %v861 = vpop.f32.mrb[0].mxu0
        %v862 = vadd.f32 %v577, %v861
        %v863 = vpop.f32.mrb[0].mxu0
        %v864 = vadd.f32 %v582, %v863
        %v865 = vpop.f32.mrb[0].mxu0
        %v866 = vadd.f32 %v582, %v865
        %867 = vdwg.mxu0
        %868 = vmatprep.subr.bf16.mxu0 %v714
        %869 = vmatpush1.bf16.msra.mxu0 %v713
        %870 = vmatprep.subr.bf16.mxu0 %v720
        %871 = vmatpush1.bf16.msra.mxu0 %v719
        %872 = vmatprep.subr.bf16.mxu0 %v726
        %873 = vmatpush1.bf16.msra.mxu0 %v725
        %874 = vmatprep.subr.bf16.mxu0 %v732
        %875 = vmatpush1.bf16.msra.mxu0 %v731
        %876 = vmatprep.subr.bf16.mxu0 %v738
        %877 = vmatpush1.bf16.msra.mxu0 %v737
        %878 = vmatprep.subr.bf16.mxu0 %v744
        %879 = vmatpush1.bf16.msra.mxu0 %v743
        %880 = vmatprep.subr.bf16.mxu0 %v807
        %881 = vmatpush1.bf16.msra.mxu0 %v804
        %882 = vmatprep.subr.bf16.mxu0 0
        %883 = vmatpush1.bf16.msra.mxu0 0
        %884 = vmatprep.subr.bf16.mxu0 0
        %885 = vmatpush1.bf16.msra.mxu0 0
        %886 = vmatprep.subr.bf16.mxu0 0
        %887 = vmatpush1.bf16.msra.mxu0 0
        %888 = vmatprep.subr.bf16.mxu0 0
        %889 = vmatpush1.bf16.msra.mxu0 0
        %890 = vmatprep.subr.bf16.mxu0 0
        %891 = vmatpush1.bf16.msra.mxu0 0
        %892 = vmatprep.subr.bf16.mxu0 0
        %893 = vmatpush1.bf16.msra.mxu0 0
        %894 = vmatprep.subr.bf16.mxu0 0
        %895 = vmatpush1.bf16.msra.mxu0 0
        %896 = vmatprep.subr.bf16.mxu0 0
        %897 = vmatpush1.bf16.msra.mxu0 0
        %898 = vmatprep.subr.bf16.mxu0 0
        %899 = vmatpush1.bf16.msra.mxu0 0
        %900 = vmatprep.mubr.bf16.mxu0 0
        %901 = vmatmul.mubr.bf16.gmra.mrb[0].mxu0 %v791
        %v902 = vpop.f32.mrb[0].mxu0
        %v903 = vadd.f32 %v567, %v902
        %v904 = vpop.f32.mrb[0].mxu0
        %v905 = vadd.f32 %v567, %v904
        %v906 = vpop.f32.mrb[0].mxu0
        %v907 = vadd.f32 %v572, %v906
        %v908 = vpop.f32.mrb[0].mxu0
        %v909 = vadd.f32 %v572, %v908
        %910 = vmatprep.mubr.bf16.mxu0 0
        %911 = vmatmul.mubr.bf16.gmra.mrb[0].mxu0 %v794
        %v912 = vpop.f32.mrb[0].mxu0
        %v913 = vadd.f32 %v577, %v912
        %v914 = vpop.f32.mrb[0].mxu0
        %v915 = vadd.f32 %v577, %v914
        %v916 = vpop.f32.mrb[0].mxu0
        %v917 = vadd.f32 %v582, %v916
        %v918 = vpop.f32.mrb[0].mxu0
        %v919 = vadd.f32 %v582, %v918
        %920 = vdwg.mxu0
        %921 = vmatprep.subr.bf16.mxu0 %v716
        %922 = vmatpush1.bf16.msra.mxu0 %v715
        %923 = vmatprep.subr.bf16.mxu0 %v722
        %924 = vmatpush1.bf16.msra.mxu0 %v721
        %925 = vmatprep.subr.bf16.mxu0 %v728
        %926 = vmatpush1.bf16.msra.mxu0 %v727
        %927 = vmatprep.subr.bf16.mxu0 %v734
        %928 = vmatpush1.bf16.msra.mxu0 %v733
        %929 = vmatprep.subr.bf16.mxu0 %v740
        %930 = vmatpush1.bf16.msra.mxu0 %v739
        %931 = vmatprep.subr.bf16.mxu0 %v746
        %932 = vmatpush1.bf16.msra.mxu0 %v745
        %933 = vmatprep.subr.bf16.mxu0 %v813
        %934 = vmatpush1.bf16.msra.mxu0 %v810
        %935 = vmatprep.subr.bf16.mxu0 0
        %936 = vmatpush1.bf16.msra.mxu0 0
        %937 = vmatprep.subr.bf16.mxu0 0
        %938 = vmatpush1.bf16.msra.mxu0 0
        %939 = vmatprep.subr.bf16.mxu0 0
        %940 = vmatpush1.bf16.msra.mxu0 0
        %941 = vmatprep.subr.bf16.mxu0 0
        %942 = vmatpush1.bf16.msra.mxu0 0
        %943 = vmatprep.subr.bf16.mxu0 0
        %944 = vmatpush1.bf16.msra.mxu0 0
        %945 = vmatprep.subr.bf16.mxu0 0
        %946 = vmatpush1.bf16.msra.mxu0 0
        %947 = vmatprep.subr.bf16.mxu0 0
        %948 = vmatpush1.bf16.msra.mxu0 0
        %949 = vmatprep.subr.bf16.mxu0 0
        %950 = vmatpush1.bf16.msra.mxu0 0
        %951 = vmatprep.subr.bf16.mxu0 0
        %952 = vmatpush1.bf16.msra.mxu0 0
        %953 = vmatprep.mubr.bf16.mxu0 0
        %954 = vmatmul.mubr.bf16.gmra.mrb[0].mxu0 %v791
        %v955 = vpop.f32.mrb[0].mxu0
        %v956 = vadd.f32 %v567, %v955
        %v957 = vpop.f32.mrb[0].mxu0
        %v958 = vadd.f32 %v567, %v957
        %v959 = vpop.f32.mrb[0].mxu0
        %v960 = vadd.f32 %v572, %v959
        %v961 = vpop.f32.mrb[0].mxu0
        %v962 = vadd.f32 %v572, %v961
        %963 = vmatprep.mubr.bf16.mxu0 0
        %964 = vmatmul.mubr.bf16.gmra.mrb[0].mxu0 %v794
        %v965 = vpop.f32.mrb[0].mxu0
        %v966 = vadd.f32 %v577, %v965
        %v967 = vpop.f32.mrb[0].mxu0
        %v968 = vadd.f32 %v577, %v967
        %v969 = vpop.f32.mrb[0].mxu0
        %v970 = vadd.f32 %v582, %v969
        %v971 = vpop.f32.mrb[0].mxu0
        %v972 = vadd.f32 %v582, %v971
        %973 = vdwg.mxu0
        %vm974 = vcmp.gt.f32.partialorder %v850, 0.0
        %vm975 = vcmp.gt.f32.partialorder %v852, 0.0
        %vm976 = vcmp.gt.f32.partialorder %v903, 0.0
        %vm977 = vcmp.gt.f32.partialorder %v905, 0.0
        %vm978 = vcmp.gt.f32.partialorder %v956, 0.0
        %vm979 = vcmp.gt.f32.partialorder %v958, 0.0
        %vm980 = vcmp.gt.f32.partialorder %v854, 0.0
        %vm981 = vcmp.gt.f32.partialorder %v856, 0.0
        %vm982 = vcmp.gt.f32.partialorder %v907, 0.0
        %vm983 = vcmp.gt.f32.partialorder %v909, 0.0
        %vm984 = vcmp.gt.f32.partialorder %v960, 0.0
        %vm985 = vcmp.gt.f32.partialorder %v962, 0.0
        %vm986 = vcmp.gt.f32.partialorder %v860, 0.0
        %vm987 = vcmp.gt.f32.partialorder %v862, 0.0
        %vm988 = vcmp.gt.f32.partialorder %v913, 0.0
        %vm989 = vcmp.gt.f32.partialorder %v915, 0.0
        %vm990 = vcmp.gt.f32.partialorder %v966, 0.0
        %vm991 = vcmp.gt.f32.partialorder %v968, 0.0
        %vm992 = vcmp.gt.f32.partialorder %v864, 0.0
        %vm993 = vcmp.gt.f32.partialorder %v866, 0.0
        %vm994 = vcmp.gt.f32.partialorder %v917, 0.0
        %vm995 = vcmp.gt.f32.partialorder %v919, 0.0
        %vm996 = vcmp.gt.f32.partialorder %v970, 0.0
        %vm997 = vcmp.gt.f32.partialorder %v972, 0.0
        %v998 = vmin.f32 %v850, 0.0
        %v999 = vmin.f32 %v852, 0.0
        %v1000 = vmin.f32 %v903, 0.0
        %v1001 = vmin.f32 %v905, 0.0
        %v1002 = vmin.f32 %v956, 0.0
        %v1003 = vmin.f32 %v958, 0.0
        %v1004 = vmin.f32 %v854, 0.0
        %v1005 = vmin.f32 %v856, 0.0
        %v1006 = vmin.f32 %v907, 0.0
        %v1007 = vmin.f32 %v909, 0.0
        %v1008 = vmin.f32 %v960, 0.0
        %v1009 = vmin.f32 %v962, 0.0
        %v1010 = vmin.f32 %v860, 0.0
        %v1011 = vmin.f32 %v862, 0.0
        %v1012 = vmin.f32 %v913, 0.0
        %v1013 = vmin.f32 %v915, 0.0
        %v1014 = vmin.f32 %v966, 0.0
        %v1015 = vmin.f32 %v968, 0.0
        %v1016 = vmin.f32 %v864, 0.0
        %v1017 = vmin.f32 %v866, 0.0
        %v1018 = vmin.f32 %v917, 0.0
        %v1019 = vmin.f32 %v919, 0.0
        %v1020 = vmin.f32 %v970, 0.0
        %v1021 = vmin.f32 %v972, 0.0
        %v1022 = vmul.f32 %v998, 1.442695
        %v1023 = vpow.pop %v1022
        %v1024 = vmul.f32 %v999, 1.442695
        %v1025 = vpow.pop %v1024
        %v1026 = vmul.f32 %v1000, 1.442695
        %v1027 = vpow.pop %v1026
        %v1028 = vmul.f32 %v1001, 1.442695
        %v1029 = vpow.pop %v1028
        %v1030 = vmul.f32 %v1002, 1.442695
        %v1031 = vpow.pop %v1030
        %v1032 = vmul.f32 %v1003, 1.442695
        %v1033 = vpow.pop %v1032
        %v1034 = vmul.f32 %v1004, 1.442695
        %v1035 = vpow.pop %v1034
        %v1036 = vmul.f32 %v1005, 1.442695
        %v1037 = vpow.pop %v1036
        %v1038 = vmul.f32 %v1006, 1.442695
        %v1039 = vpow.pop %v1038
        %v1040 = vmul.f32 %v1007, 1.442695
        %v1041 = vpow.pop %v1040
        %v1042 = vmul.f32 %v1008, 1.442695
        %v1043 = vpow.pop %v1042
        %v1044 = vmul.f32 %v1009, 1.442695
        %v1045 = vpow.pop %v1044
        %v1046 = vmul.f32 %v1010, 1.442695
        %v1047 = vpow.pop %v1046
        %v1048 = vmul.f32 %v1011, 1.442695
        %v1049 = vpow.pop %v1048
        %v1050 = vmul.f32 %v1012, 1.442695
        %v1051 = vpow.pop %v1050
        %v1052 = vmul.f32 %v1013, 1.442695
        %v1053 = vpow.pop %v1052
        %v1054 = vmul.f32 %v1014, 1.442695
        %v1055 = vpow.pop %v1054
        %v1056 = vmul.f32 %v1015, 1.442695
        %v1057 = vpow.pop %v1056
        %v1058 = vmul.f32 %v1016, 1.442695
        %v1059 = vpow.pop %v1058
        %v1060 = vmul.f32 %v1017, 1.442695
        %v1061 = vpow.pop %v1060
        %v1062 = vmul.f32 %v1018, 1.442695
        %v1063 = vpow.pop %v1062
        %v1064 = vmul.f32 %v1019, 1.442695
        %v1065 = vpow.pop %v1064
        %v1066 = vmul.f32 %v1020, 1.442695
        %v1067 = vpow.pop %v1066
        %v1068 = vmul.f32 %v1021, 1.442695
        %v1069 = vpow.pop %v1068
        %v1070 = vsub.f32 %v1023, 1.0
        %v1071 = vsub.f32 %v1025, 1.0
        %v1072 = vsub.f32 %v1027, 1.0
        %v1073 = vsub.f32 %v1029, 1.0
        %v1074 = vsub.f32 %v1031, 1.0
        %v1075 = vsub.f32 %v1033, 1.0
        %v1076 = vsub.f32 %v1035, 1.0
        %v1077 = vsub.f32 %v1037, 1.0
        %v1078 = vsub.f32 %v1039, 1.0
        %v1079 = vsub.f32 %v1041, 1.0
        %v1080 = vsub.f32 %v1043, 1.0
        %v1081 = vsub.f32 %v1045, 1.0
        %v1082 = vsub.f32 %v1047, 1.0
        %v1083 = vsub.f32 %v1049, 1.0
        %v1084 = vsub.f32 %v1051, 1.0
        %v1085 = vsub.f32 %v1053, 1.0
        %v1086 = vsub.f32 %v1055, 1.0
        %v1087 = vsub.f32 %v1057, 1.0
        %v1088 = vsub.f32 %v1059, 1.0
        %v1089 = vsub.f32 %v1061, 1.0
        %v1090 = vsub.f32 %v1063, 1.0
        %v1091 = vsub.f32 %v1065, 1.0
        %v1092 = vsub.f32 %v1067, 1.0
        %v1093 = vsub.f32 %v1069, 1.0
        %v1094 = vsel %vm974, %v850, %v1070
        %v1095 = vsel %vm975, %v852, %v1071
        %v1096 = vsel %vm976, %v903, %v1072
        %v1097 = vsel %vm977, %v905, %v1073
        %v1098 = vsel %vm978, %v956, %v1074
        %v1099 = vsel %vm979, %v958, %v1075
        %v1100 = vsel %vm980, %v854, %v1076
        %v1101 = vsel %vm981, %v856, %v1077
        %v1102 = vsel %vm982, %v907, %v1078
        %v1103 = vsel %vm983, %v909, %v1079
        %v1104 = vsel %vm984, %v960, %v1080
        %v1105 = vsel %vm985, %v962, %v1081
        %v1106 = vsel %vm986, %v860, %v1082
        %v1107 = vsel %vm987, %v862, %v1083
        %v1108 = vsel %vm988, %v913, %v1084
        %v1109 = vsel %vm989, %v915, %v1085
        %v1110 = vsel %vm990, %v966, %v1086
        %v1111 = vsel %vm991, %v968, %v1087
        %v1112 = vsel %vm992, %v864, %v1088
        %v1113 = vsel %vm993, %v866, %v1089
        %v1114 = vsel %vm994, %v917, %v1090
        %v1115 = vsel %vm995, %v919, %v1091
        %v1116 = vsel %vm996, %v970, %v1092
        %v1117 = vsel %vm997, %v972, %v1093
        %v1118 = vpack.c.bf16 %v1100, %v1094
        %v1119 = vpack.c.bf16 %v1101, %v1095
        %v1120 = vpack.c.bf16 %v1102, %v1096
        %v1121 = vpack.c.bf16 %v1103, %v1097
        %v1122 = vpack.c.bf16 %v1104, %v1098
        %v1123 = vpack.c.bf16 %v1105, %v1099
        %v1124 = vpack.c.bf16 %v1112, %v1106
        %v1125 = vpack.c.bf16 %v1113, %v1107
        %v1126 = vpack.c.bf16 %v1114, %v1108
        %v1127 = vpack.c.bf16 %v1115, %v1109
        %v1128 = vpack.c.bf16 %v1116, %v1110
        %v1129 = vpack.c.bf16 %v1117, %v1111
        %v1226 = vunpack.c.l.b16 %v405
        %v1227 = vunpack.c.h.b16 %v405
        %v1228 = vunpack.c.l.b16 %v406
        %v1229 = vunpack.c.h.b16 %v406
        %v1230 = vunpack.c.l.b16 %v407
        %v1231 = vunpack.c.h.b16 %v407
        %v1232 = vunpack.c.l.b16 %v408
        %v1233 = vunpack.c.h.b16 %v408
        %v1234 = vunpack.c.l.b16 %v409
        %v1235 = vunpack.c.h.b16 %v409
        %v1236 = vunpack.c.l.b16 %v410
        %v1237 = vunpack.c.h.b16 %v410
        %v1238 = vunpack.c.l.b16 %v411
        %v1239 = vunpack.c.h.b16 %v411
        %v1240 = vunpack.c.l.b16 %v412
        %v1241 = vunpack.c.h.b16 %v412
        %v1242 = vunpack.c.l.b16 %v413
        %v1243 = vunpack.c.h.b16 %v413
        %v1244 = vunpack.c.l.b16 %v414
        %v1245 = vunpack.c.h.b16 %v414
        %v1246 = vunpack.c.l.b16 %v415
        %v1247 = vunpack.c.h.b16 %v415
        %v1248 = vunpack.c.l.b16 %v416
        %v1249 = vunpack.c.h.b16 %v416
        %v1250 = vunpack.c.l.b16 %v417
        %v1251 = vunpack.c.h.b16 %v417
        %v1252 = vunpack.c.l.b16 %v418
        %v1253 = vunpack.c.h.b16 %v418
        %v1254 = vunpack.c.l.b16 %v419
        %v1255 = vunpack.c.h.b16 %v419
        %v1256 = vunpack.c.l.b16 %v420
        %v1257 = vunpack.c.h.b16 %v420
        %v1258 = vunpack.c.l.b16 %v421
        %v1259 = vunpack.c.h.b16 %v421
        %v1260 = vunpack.c.l.b16 %v422
        %v1261 = vunpack.c.h.b16 %v422
        %v1262 = vunpack.c.l.b16 %v423
        %v1263 = vunpack.c.h.b16 %v423
        %v1264 = vunpack.c.l.b16 %v424
        %v1265 = vunpack.c.h.b16 %v424
        %v1266 = vunpack.c.l.b16 %v425
        %v1267 = vunpack.c.h.b16 %v425
        %v1268 = vunpack.c.l.b16 %v426
        %v1269 = vunpack.c.h.b16 %v426
        %v1270 = vunpack.c.l.b16 %v427
        %v1271 = vunpack.c.h.b16 %v427
        %v1272 = vunpack.c.l.b16 %v428
        %v1273 = vunpack.c.h.b16 %v428
        %v1274 = vunpack.c.l.b16 %v429
        %v1275 = vunpack.c.h.b16 %v429
        %v1276 = vunpack.c.l.b16 %v430
        %v1277 = vunpack.c.h.b16 %v430
        %v1278 = vunpack.c.l.b16 %v431
        %v1279 = vunpack.c.h.b16 %v431
        %v1280 = vunpack.c.l.b16 %v432
        %v1281 = vunpack.c.h.b16 %v432
        %v1282 = vunpack.c.l.b16 %v433
        %v1283 = vunpack.c.h.b16 %v433
        %v1284 = vunpack.c.l.b16 %v434
        %v1285 = vunpack.c.h.b16 %v434
        %v1286 = vunpack.c.l.b16 %v435
        %v1287 = vunpack.c.h.b16 %v435
        %v1288 = vunpack.c.l.b16 %v436
        %v1289 = vunpack.c.h.b16 %v436
        %v1290 = vunpack.c.l.b16 %v437
        %v1291 = vunpack.c.h.b16 %v437
        %v1292 = vunpack.c.l.b16 %v438
        %v1293 = vunpack.c.h.b16 %v438
        %v1294 = vunpack.c.l.b16 %v439
        %v1295 = vunpack.c.h.b16 %v439
        %v1296 = vunpack.c.l.b16 %v440
        %v1297 = vunpack.c.h.b16 %v440
        %v1298 = vunpack.c.l.b16 %v441
        %v1299 = vunpack.c.h.b16 %v441
        %v1300 = vunpack.c.l.b16 %v442
        %v1301 = vunpack.c.h.b16 %v442
        %v1302 = vunpack.c.l.b16 %v443
        %v1303 = vunpack.c.h.b16 %v443
        %v1304 = vunpack.c.l.b16 %v444
        %v1305 = vunpack.c.h.b16 %v444
        %v1306 = vunpack.c.l.b16 %v445
        %v1307 = vunpack.c.h.b16 %v445
        %v1308 = vunpack.c.l.b16 %v446
        %v1309 = vunpack.c.h.b16 %v446
        %v1310 = vunpack.c.l.b16 %v447
        %v1311 = vunpack.c.h.b16 %v447
        %v1312 = vunpack.c.l.b16 %v448
        %v1313 = vunpack.c.h.b16 %v448
        %v1314 = vunpack.c.l.b16 %v449
        %v1315 = vunpack.c.h.b16 %v449
        %v1316 = vunpack.c.l.b16 %v450
        %v1317 = vunpack.c.h.b16 %v450
        %v1318 = vunpack.c.l.b16 %v451
        %v1319 = vunpack.c.h.b16 %v451
        %v1320 = vunpack.c.l.b16 %v452
        %v1321 = vunpack.c.h.b16 %v452
        %v1322 = vunpack.c.l.b16 %v453
        %v1323 = vunpack.c.h.b16 %v453
        %v1324 = vunpack.c.l.b16 %v454
        %v1325 = vunpack.c.h.b16 %v454
        %v1326 = vunpack.c.l.b16 %v455
        %v1327 = vunpack.c.h.b16 %v455
        %v1328 = vunpack.c.l.b16 %v456
        %v1329 = vunpack.c.h.b16 %v456
        %v1330 = vunpack.c.l.b16 %v457
        %v1331 = vunpack.c.h.b16 %v457
        %v1332 = vunpack.c.l.b16 %v458
        %v1333 = vunpack.c.h.b16 %v458
        %v1334 = vunpack.c.l.b16 %v459
        %v1335 = vunpack.c.h.b16 %v459
        %v1336 = vunpack.c.l.b16 %v460
        %v1337 = vunpack.c.h.b16 %v460
        %v1338 = vunpack.c.l.b16 %v461
        %v1339 = vunpack.c.h.b16 %v461
        %v1340 = vunpack.c.l.b16 %v462
        %v1341 = vunpack.c.h.b16 %v462
        %v1342 = vunpack.c.l.b16 %v463
        %v1343 = vunpack.c.h.b16 %v463
        %v1344 = vunpack.c.l.b16 %v464
        %v1345 = vunpack.c.h.b16 %v464
        %v1346 = vunpack.c.l.b16 %v465
        %v1347 = vunpack.c.h.b16 %v465
        %v1348 = vunpack.c.l.b16 %v466
        %v1349 = vunpack.c.h.b16 %v466
        %v1350 = vunpack.c.l.b16 %v467
        %v1351 = vunpack.c.h.b16 %v467
        %v1352 = vunpack.c.l.b16 %v468
        %v1353 = vunpack.c.h.b16 %v468
        %v1354 = vunpack.c.l.b16 %v469
        %v1355 = vunpack.c.h.b16 %v469
        %v1356 = vunpack.c.l.b16 %v470
        %v1357 = vunpack.c.h.b16 %v470
        %v1358 = vunpack.c.l.b16 %v471
        %v1359 = vunpack.c.h.b16 %v471
        %v1360 = vunpack.c.l.b16 %v472
        %v1361 = vunpack.c.h.b16 %v472
        %v1362 = vunpack.c.l.b16 %v473
        %v1363 = vunpack.c.h.b16 %v473
        %v1364 = vunpack.c.l.b16 %v474
        %v1365 = vunpack.c.h.b16 %v474
        %v1366 = vunpack.c.l.b16 %v475
        %v1367 = vunpack.c.h.b16 %v475
        %v1368 = vunpack.c.l.b16 %v476
        %v1369 = vunpack.c.h.b16 %v476
        %v1370 = vunpack.c.l.b16 %v477
        %v1371 = vunpack.c.h.b16 %v477
        %v1372 = vunpack.c.l.b16 %v478
        %v1373 = vunpack.c.h.b16 %v478
        %v1374 = vunpack.c.l.b16 %v479
        %v1375 = vunpack.c.h.b16 %v479
        %v1376 = vunpack.c.l.b16 %v480
        %v1377 = vunpack.c.h.b16 %v480
        %v1378 = vunpack.c.l.b16 %v481
        %v1379 = vunpack.c.h.b16 %v481
        %v1380 = vunpack.c.l.b16 %v482
        %v1381 = vunpack.c.h.b16 %v482
        %v1382 = vunpack.c.l.b16 %v483
        %v1383 = vunpack.c.h.b16 %v483
        %v1384 = vunpack.c.l.b16 %v484
        %v1385 = vunpack.c.h.b16 %v484
        %v1386 = vunpack.c.l.b16 %v485
        %v1387 = vunpack.c.h.b16 %v485
        %v1388 = vunpack.c.l.b16 %v486
        %v1389 = vunpack.c.h.b16 %v486
        %v1390 = vunpack.c.l.b16 %v487
        %v1391 = vunpack.c.h.b16 %v487
        %v1392 = vunpack.c.l.b16 %v488
        %v1393 = vunpack.c.h.b16 %v488
        %v1394 = vunpack.c.l.b16 %v489
        %v1395 = vunpack.c.h.b16 %v489
        %v1396 = vunpack.c.l.b16 %v490
        %v1397 = vunpack.c.h.b16 %v490
        %v1398 = vunpack.c.l.b16 %v491
        %v1399 = vunpack.c.h.b16 %v491
        %v1400 = vunpack.c.l.b16 %v492
        %v1401 = vunpack.c.h.b16 %v492
        %v1402 = vunpack.c.l.b16 %v493
        %v1403 = vunpack.c.h.b16 %v493
        %v1404 = vunpack.c.l.b16 %v494
        %v1405 = vunpack.c.h.b16 %v494
        %v1406 = vunpack.c.l.b16 %v495
        %v1407 = vunpack.c.h.b16 %v495
        %v1408 = vunpack.c.l.b16 %v496
        %v1409 = vunpack.c.h.b16 %v496
        %v1410 = vunpack.c.l.b16 %v497
        %v1411 = vunpack.c.h.b16 %v497
        %v1412 = vunpack.c.l.b16 %v498
        %v1413 = vunpack.c.h.b16 %v498
        %v1414 = vunpack.c.l.b16 %v499
        %v1415 = vunpack.c.h.b16 %v499
        %v1416 = vunpack.c.l.b16 %v500
        %v1417 = vunpack.c.h.b16 %v500
        %v1418 = vpack.c.b16 %v1228, %v1226
        %v1419 = vpack.c.b16 %v1229, %v1227
        %v1420 = vpack.c.b16 %v1232, %v1230
        %v1421 = vpack.c.b16 %v1233, %v1231
        %v1422 = vpack.c.b16 %v1236, %v1234
        %v1423 = vpack.c.b16 %v1237, %v1235
        %v1424 = vpack.c.b16 %v1240, %v1238
        %v1425 = vpack.c.b16 %v1241, %v1239
        %v1426 = vpack.c.b16 %v1244, %v1242
        %v1427 = vpack.c.b16 %v1245, %v1243
        %v1428 = vpack.c.b16 %v1248, %v1246
        %v1429 = vpack.c.b16 %v1249, %v1247
        %v1430 = vpack.c.b16 %v1252, %v1250
        %v1431 = vpack.c.b16 %v1253, %v1251
        %v1432 = vpack.c.b16 %v1256, %v1254
        %v1433 = vpack.c.b16 %v1257, %v1255
        %v1434 = vpack.c.b16 %v1260, %v1258
        %v1435 = vpack.c.b16 %v1261, %v1259
        %v1436 = vpack.c.b16 %v1264, %v1262
        %v1437 = vpack.c.b16 %v1265, %v1263
        %v1438 = vpack.c.b16 %v1268, %v1266
        %v1439 = vpack.c.b16 %v1269, %v1267
        %v1440 = vpack.c.b16 %v1272, %v1270
        %v1441 = vpack.c.b16 %v1273, %v1271
        %v1442 = vpack.c.b16 %v1276, %v1274
        %v1443 = vpack.c.b16 %v1277, %v1275
        %v1444 = vpack.c.b16 %v1280, %v1278
        %v1445 = vpack.c.b16 %v1281, %v1279
        %v1446 = vpack.c.b16 %v1284, %v1282
        %v1447 = vpack.c.b16 %v1285, %v1283
        %v1448 = vpack.c.b16 %v1288, %v1286
        %v1449 = vpack.c.b16 %v1289, %v1287
        %v1450 = vpack.c.b16 %v1292, %v1290
        %v1451 = vpack.c.b16 %v1293, %v1291
        %v1452 = vpack.c.b16 %v1296, %v1294
        %v1453 = vpack.c.b16 %v1297, %v1295
        %v1454 = vpack.c.b16 %v1300, %v1298
        %v1455 = vpack.c.b16 %v1301, %v1299
        %v1456 = vpack.c.b16 %v1304, %v1302
        %v1457 = vpack.c.b16 %v1305, %v1303
        %v1458 = vpack.c.b16 %v1308, %v1306
        %v1459 = vpack.c.b16 %v1309, %v1307
        %v1460 = vpack.c.b16 %v1312, %v1310
        %v1461 = vpack.c.b16 %v1313, %v1311
        %v1462 = vpack.c.b16 %v1316, %v1314
        %v1463 = vpack.c.b16 %v1317, %v1315
        %v1464 = vpack.c.b16 %v1320, %v1318
        %v1465 = vpack.c.b16 %v1321, %v1319
        %v1466 = vpack.c.b16 %v1324, %v1322
        %v1467 = vpack.c.b16 %v1325, %v1323
        %v1468 = vpack.c.b16 %v1328, %v1326
        %v1469 = vpack.c.b16 %v1329, %v1327
        %v1470 = vpack.c.b16 %v1332, %v1330
        %v1471 = vpack.c.b16 %v1333, %v1331
        %v1472 = vpack.c.b16 %v1336, %v1334
        %v1473 = vpack.c.b16 %v1337, %v1335
        %v1474 = vpack.c.b16 %v1340, %v1338
        %v1475 = vpack.c.b16 %v1341, %v1339
        %v1476 = vpack.c.b16 %v1344, %v1342
        %v1477 = vpack.c.b16 %v1345, %v1343
        %v1478 = vpack.c.b16 %v1348, %v1346
        %v1479 = vpack.c.b16 %v1349, %v1347
        %v1480 = vpack.c.b16 %v1352, %v1350
        %v1481 = vpack.c.b16 %v1353, %v1351
        %v1482 = vpack.c.b16 %v1356, %v1354
        %v1483 = vpack.c.b16 %v1357, %v1355
        %v1484 = vpack.c.b16 %v1360, %v1358
        %v1485 = vpack.c.b16 %v1361, %v1359
        %v1486 = vpack.c.b16 %v1364, %v1362
        %v1487 = vpack.c.b16 %v1365, %v1363
        %v1488 = vpack.c.b16 %v1368, %v1366
        %v1489 = vpack.c.b16 %v1369, %v1367
        %v1490 = vpack.c.b16 %v1372, %v1370
        %v1491 = vpack.c.b16 %v1373, %v1371
        %v1492 = vpack.c.b16 %v1376, %v1374
        %v1493 = vpack.c.b16 %v1377, %v1375
        %v1494 = vpack.c.b16 %v1380, %v1378
        %v1495 = vpack.c.b16 %v1381, %v1379
        %v1496 = vpack.c.b16 %v1384, %v1382
        %v1497 = vpack.c.b16 %v1385, %v1383
        %v1498 = vpack.c.b16 %v1388, %v1386
        %v1499 = vpack.c.b16 %v1389, %v1387
        %v1500 = vpack.c.b16 %v1392, %v1390
        %v1501 = vpack.c.b16 %v1393, %v1391
        %v1502 = vpack.c.b16 %v1396, %v1394
        %v1503 = vpack.c.b16 %v1397, %v1395
        %v1504 = vpack.c.b16 %v1400, %v1398
        %v1505 = vpack.c.b16 %v1401, %v1399
        %v1506 = vpack.c.b16 %v1404, %v1402
        %v1507 = vpack.c.b16 %v1405, %v1403
        %v1508 = vpack.c.b16 %v1408, %v1406
        %v1509 = vpack.c.b16 %v1409, %v1407
        %v1510 = vpack.c.b16 %v1412, %v1410
        %v1511 = vpack.c.b16 %v1413, %v1411
        %v1512 = vpack.c.b16 %v1416, %v1414
        %v1513 = vpack.c.b16 %v1417, %v1415
        %1610 = vmatprep.subr.bf16.mxu0 %v1419
        %1611 = vmatpush1.bf16.msra.mxu0 %v1418
        %1612 = vmatprep.subr.bf16.mxu0 %v1421
        %1613 = vmatpush1.bf16.msra.mxu0 %v1420
        %1614 = vmatprep.subr.bf16.mxu0 %v1423
        %1615 = vmatpush1.bf16.msra.mxu0 %v1422
        %1616 = vmatprep.subr.bf16.mxu0 %v1425
        %1617 = vmatpush1.bf16.msra.mxu0 %v1424
        %1618 = vmatprep.subr.bf16.mxu0 %v1427
        %1619 = vmatpush1.bf16.msra.mxu0 %v1426
        %1620 = vmatprep.subr.bf16.mxu0 %v1429
        %1621 = vmatpush1.bf16.msra.mxu0 %v1428
        %1622 = vmatprep.subr.bf16.mxu0 %v1431
        %1623 = vmatpush1.bf16.msra.mxu0 %v1430
        %1624 = vmatprep.subr.bf16.mxu0 %v1433
        %1625 = vmatpush1.bf16.msra.mxu0 %v1432
        %1626 = vmatprep.subr.bf16.mxu0 %v1435
        %1627 = vmatpush1.bf16.msra.mxu0 %v1434
        %1628 = vmatprep.subr.bf16.mxu0 %v1437
        %1629 = vmatpush1.bf16.msra.mxu0 %v1436
        %1630 = vmatprep.subr.bf16.mxu0 %v1439
        %1631 = vmatpush1.bf16.msra.mxu0 %v1438
        %1632 = vmatprep.subr.bf16.mxu0 %v1441
        %1633 = vmatpush1.bf16.msra.mxu0 %v1440
        %1634 = vmatprep.subr.bf16.mxu0 %v1443
        %1635 = vmatpush1.bf16.msra.mxu0 %v1442
        %1636 = vmatprep.subr.bf16.mxu0 %v1445
        %1637 = vmatpush1.bf16.msra.mxu0 %v1444
        %1638 = vmatprep.subr.bf16.mxu0 %v1447
        %1639 = vmatpush1.bf16.msra.mxu0 %v1446
        %1640 = vmatprep.subr.bf16.mxu0 %v1449
        %1641 = vmatpush1.bf16.msra.mxu0 %v1448
        %1642 = vmatprep.mubr.bf16.mxu0 %v1119
        %1643 = vmatmul.mubr.bf16.gmra.mrb[0].mxu0 %v1118
        %v1644 = vpop.f32.mrb[0].mxu0
        %v1645 = vadd.f32 0.0, %v1644
        %v1646 = vpop.f32.mrb[0].mxu0
        %v1647 = vadd.f32 0.0, %v1646
        %v1648 = vpop.f32.mrb[0].mxu0
        %v1649 = vadd.f32 0.0, %v1648
        %v1650 = vpop.f32.mrb[0].mxu0
        %v1651 = vadd.f32 0.0, %v1650
        %1652 = vmatprep.mubr.bf16.mxu0 %v1125
        %1653 = vmatmul.mubr.bf16.gmra.mrb[0].mxu0 %v1124
        %v1654 = vpop.f32.mrb[0].mxu0
        %v1655 = vadd.f32 0.0, %v1654
        %v1656 = vpop.f32.mrb[0].mxu0
        %v1657 = vadd.f32 0.0, %v1656
        %v1658 = vpop.f32.mrb[0].mxu0
        %v1659 = vadd.f32 0.0, %v1658
        %v1660 = vpop.f32.mrb[0].mxu0
        %v1661 = vadd.f32 0.0, %v1660
        %1662 = vdwg.mxu0
        %1663 = vmatprep.subr.bf16.mxu0 %v1451
        %1664 = vmatpush1.bf16.msra.mxu0 %v1450
        %1665 = vmatprep.subr.bf16.mxu0 %v1453
        %1666 = vmatpush1.bf16.msra.mxu0 %v1452
        %1667 = vmatprep.subr.bf16.mxu0 %v1455
        %1668 = vmatpush1.bf16.msra.mxu0 %v1454
        %1669 = vmatprep.subr.bf16.mxu0 %v1457
        %1670 = vmatpush1.bf16.msra.mxu0 %v1456
        %1671 = vmatprep.subr.bf16.mxu0 %v1459
        %1672 = vmatpush1.bf16.msra.mxu0 %v1458
        %1673 = vmatprep.subr.bf16.mxu0 %v1461
        %1674 = vmatpush1.bf16.msra.mxu0 %v1460
        %1675 = vmatprep.subr.bf16.mxu0 %v1463
        %1676 = vmatpush1.bf16.msra.mxu0 %v1462
        %1677 = vmatprep.subr.bf16.mxu0 %v1465
        %1678 = vmatpush1.bf16.msra.mxu0 %v1464
        %1679 = vmatprep.subr.bf16.mxu0 %v1467
        %1680 = vmatpush1.bf16.msra.mxu0 %v1466
        %1681 = vmatprep.subr.bf16.mxu0 %v1469
        %1682 = vmatpush1.bf16.msra.mxu0 %v1468
        %1683 = vmatprep.subr.bf16.mxu0 %v1471
        %1684 = vmatpush1.bf16.msra.mxu0 %v1470
        %1685 = vmatprep.subr.bf16.mxu0 %v1473
        %1686 = vmatpush1.bf16.msra.mxu0 %v1472
        %1687 = vmatprep.subr.bf16.mxu0 %v1475
        %1688 = vmatpush1.bf16.msra.mxu0 %v1474
        %1689 = vmatprep.subr.bf16.mxu0 %v1477
        %1690 = vmatpush1.bf16.msra.mxu0 %v1476
        %1691 = vmatprep.subr.bf16.mxu0 %v1479
        %1692 = vmatpush1.bf16.msra.mxu0 %v1478
        %1693 = vmatprep.subr.bf16.mxu0 %v1481
        %1694 = vmatpush1.bf16.msra.mxu0 %v1480
        %1695 = vmatprep.mubr.bf16.mxu0 %v1121
        %1696 = vmatmul.mubr.bf16.gmra.mrb[0].mxu0 %v1120
        %v1697 = vpop.f32.mrb[0].mxu0
        %v1698 = vadd.f32 %v1645, %v1697
        %v1699 = vpop.f32.mrb[0].mxu0
        %v1700 = vadd.f32 %v1647, %v1699
        %v1701 = vpop.f32.mrb[0].mxu0
        %v1702 = vadd.f32 %v1649, %v1701
        %v1703 = vpop.f32.mrb[0].mxu0
        %v1704 = vadd.f32 %v1651, %v1703
        %1705 = vmatprep.mubr.bf16.mxu0 %v1127
        %1706 = vmatmul.mubr.bf16.gmra.mrb[0].mxu0 %v1126
        %v1707 = vpop.f32.mrb[0].mxu0
        %v1708 = vadd.f32 %v1655, %v1707
        %v1709 = vpop.f32.mrb[0].mxu0
        %v1710 = vadd.f32 %v1657, %v1709
        %v1711 = vpop.f32.mrb[0].mxu0
        %v1712 = vadd.f32 %v1659, %v1711
        %v1713 = vpop.f32.mrb[0].mxu0
        %v1714 = vadd.f32 %v1661, %v1713
        %1715 = vdwg.mxu0
        %1716 = vmatprep.subr.bf16.mxu0 %v1483
        %1717 = vmatpush1.bf16.msra.mxu0 %v1482
        %1718 = vmatprep.subr.bf16.mxu0 %v1485
        %1719 = vmatpush1.bf16.msra.mxu0 %v1484
        %1720 = vmatprep.subr.bf16.mxu0 %v1487
        %1721 = vmatpush1.bf16.msra.mxu0 %v1486
        %1722 = vmatprep.subr.bf16.mxu0 %v1489
        %1723 = vmatpush1.bf16.msra.mxu0 %v1488
        %1724 = vmatprep.subr.bf16.mxu0 %v1491
        %1725 = vmatpush1.bf16.msra.mxu0 %v1490
        %1726 = vmatprep.subr.bf16.mxu0 %v1493
        %1727 = vmatpush1.bf16.msra.mxu0 %v1492
        %1728 = vmatprep.subr.bf16.mxu0 %v1495
        %1729 = vmatpush1.bf16.msra.mxu0 %v1494
        %1730 = vmatprep.subr.bf16.mxu0 %v1497
        %1731 = vmatpush1.bf16.msra.mxu0 %v1496
        %1732 = vmatprep.subr.bf16.mxu0 %v1499
        %1733 = vmatpush1.bf16.msra.mxu0 %v1498
        %1734 = vmatprep.subr.bf16.mxu0 %v1501
        %1735 = vmatpush1.bf16.msra.mxu0 %v1500
        %1736 = vmatprep.subr.bf16.mxu0 %v1503
        %1737 = vmatpush1.bf16.msra.mxu0 %v1502
        %1738 = vmatprep.subr.bf16.mxu0 %v1505
        %1739 = vmatpush1.bf16.msra.mxu0 %v1504
        %1740 = vmatprep.subr.bf16.mxu0 %v1507
        %1741 = vmatpush1.bf16.msra.mxu0 %v1506
        %1742 = vmatprep.subr.bf16.mxu0 %v1509
        %1743 = vmatpush1.bf16.msra.mxu0 %v1508
        %1744 = vmatprep.subr.bf16.mxu0 %v1511
        %1745 = vmatpush1.bf16.msra.mxu0 %v1510
        %1746 = vmatprep.subr.bf16.mxu0 %v1513
        %1747 = vmatpush1.bf16.msra.mxu0 %v1512
        %1748 = vmatprep.mubr.bf16.mxu0 %v1123
        %1749 = vmatmul.mubr.bf16.gmra.mrb[0].mxu0 %v1122
        %v1750 = vpop.f32.mrb[0].mxu0
        %v1751 = vadd.f32 %v1698, %v1750
        %v1752 = vpop.f32.mrb[0].mxu0
        %v1753 = vadd.f32 %v1700, %v1752
        %v1754 = vpop.f32.mrb[0].mxu0
        %v1755 = vadd.f32 %v1702, %v1754
        %v1756 = vpop.f32.mrb[0].mxu0
        %v1757 = vadd.f32 %v1704, %v1756
        %1758 = vmatprep.mubr.bf16.mxu0 %v1129
        %1759 = vmatmul.mubr.bf16.gmra.mrb[0].mxu0 %v1128
        %v1760 = vpop.f32.mrb[0].mxu0
        %v1761 = vadd.f32 %v1708, %v1760
        %v1762 = vpop.f32.mrb[0].mxu0
        %v1763 = vadd.f32 %v1710, %v1762
        %v1764 = vpop.f32.mrb[0].mxu0
        %v1765 = vadd.f32 %v1712, %v1764
        %v1766 = vpop.f32.mrb[0].mxu0
        %v1767 = vadd.f32 %v1714, %v1766
        %1768 = vdwg.mxu0
        %v1769 = vpack.c.bf16 %v1755, %v1751
        %v1770 = vpack.c.bf16 %v1757, %v1753
        %v1771 = vpack.c.bf16 %v1765, %v1761
        %v1772 = vpack.c.bf16 %v1767, %v1763
        %1777 = vrot.lane.b32.xlu0 %v1769, 127
        %v1778 = vpop.permute.xlu0 %1777
        %1779 = vrot.lane.b32.xlu0 %v1770, 127
        %v1780 = vpop.permute.xlu0 %1779
        %1781 = vrot.lane.b32.xlu0 %v1771, 127
        %v1782 = vpop.permute.xlu0 %1781
        %1783 = vrot.lane.b32.xlu0 %v1772, 127
        %v1784 = vpop.permute.xlu0 %1783
        %vm1785 = vcmask 1039360
        %v1786 = vsel %vm1785, %v1778, %v1780
        %v1787 = vsel %vm1785, %v1782, %v1784
        %1792 = vrot.lane.b32.xlu0 %v1769, 126
        %v1793 = vpop.permute.xlu0 %1792
        %1794 = vrot.lane.b32.xlu0 %v1770, 126
        %v1795 = vpop.permute.xlu0 %1794
        %1796 = vrot.lane.b32.xlu0 %v1771, 126
        %v1797 = vpop.permute.xlu0 %1796
        %1798 = vrot.lane.b32.xlu0 %v1772, 126
        %v1799 = vpop.permute.xlu0 %1798
        %vm1800 = vcmask 1031168
        %v1801 = vsel %vm1800, %v1793, %v1795
        %v1802 = vsel %vm1800, %v1797, %v1799
        %1807 = vrot.lane.b32.xlu0 %v1769, 125
        %v1808 = vpop.permute.xlu0 %1807
        %1809 = vrot.lane.b32.xlu0 %v1770, 125
        %v1810 = vpop.permute.xlu0 %1809
        %1811 = vrot.lane.b32.xlu0 %v1771, 125
        %v1812 = vpop.permute.xlu0 %1811
        %1813 = vrot.lane.b32.xlu0 %v1772, 125
        %v1814 = vpop.permute.xlu0 %1813
        %vm1815 = vcmask 1022976
        %v1816 = vsel %vm1815, %v1808, %v1810
        %v1817 = vsel %vm1815, %v1812, %v1814
        %1822 = vrot.lane.b32.xlu0 %v1769, 124
        %v1823 = vpop.permute.xlu0 %1822
        %1824 = vrot.lane.b32.xlu0 %v1770, 124
        %v1825 = vpop.permute.xlu0 %1824
        %1826 = vrot.lane.b32.xlu0 %v1771, 124
        %v1827 = vpop.permute.xlu0 %1826
        %1828 = vrot.lane.b32.xlu0 %v1772, 124
        %v1829 = vpop.permute.xlu0 %1828
        %vm1830 = vcmask 1014784
        %v1831 = vsel %vm1830, %v1823, %v1825
        %v1832 = vsel %vm1830, %v1827, %v1829
        %1837 = vrot.lane.b32.xlu0 %v1769, 123
        %v1838 = vpop.permute.xlu0 %1837
        %1839 = vrot.lane.b32.xlu0 %v1770, 123
        %v1840 = vpop.permute.xlu0 %1839
        %1841 = vrot.lane.b32.xlu0 %v1771, 123
        %v1842 = vpop.permute.xlu0 %1841
        %1843 = vrot.lane.b32.xlu0 %v1772, 123
        %v1844 = vpop.permute.xlu0 %1843
        %vm1845 = vcmask 1006592
        %v1846 = vsel %vm1845, %v1838, %v1840
        %v1847 = vsel %vm1845, %v1842, %v1844
        %1852 = vrot.lane.b32.xlu0 %v1769, 122
        %v1853 = vpop.permute.xlu0 %1852
        %1854 = vrot.lane.b32.xlu0 %v1770, 122
        %v1855 = vpop.permute.xlu0 %1854
        %1856 = vrot.lane.b32.xlu0 %v1771, 122
        %v1857 = vpop.permute.xlu0 %1856
        %1858 = vrot.lane.b32.xlu0 %v1772, 122
        %v1859 = vpop.permute.xlu0 %1858
        %vm1860 = vcmask 998400
        %v1861 = vsel %vm1860, %v1853, %v1855
        %v1862 = vsel %vm1860, %v1857, %v1859
        %1867 = vrot.lane.b32.xlu0 %v1769, 121
        %v1868 = vpop.permute.xlu0 %1867
        %1869 = vrot.lane.b32.xlu0 %v1770, 121
        %v1870 = vpop.permute.xlu0 %1869
        %1871 = vrot.lane.b32.xlu0 %v1771, 121
        %v1872 = vpop.permute.xlu0 %1871
        %1873 = vrot.lane.b32.xlu0 %v1772, 121
        %v1874 = vpop.permute.xlu0 %1873
        %vm1875 = vcmask 990208
        %v1876 = vsel %vm1875, %v1868, %v1870
        %v1877 = vsel %vm1875, %v1872, %v1874
        %1882 = vrot.lane.b32.xlu0 %v1769, 120
        %v1883 = vpop.permute.xlu0 %1882
        %1884 = vrot.lane.b32.xlu0 %v1770, 120
        %v1885 = vpop.permute.xlu0 %1884
        %1886 = vrot.lane.b32.xlu0 %v1771, 120
        %v1887 = vpop.permute.xlu0 %1886
        %1888 = vrot.lane.b32.xlu0 %v1772, 120
        %v1889 = vpop.permute.xlu0 %1888
        %vm1890 = vcmask 982016
        %v1891 = vsel %vm1890, %v1883, %v1885
        %v1892 = vsel %vm1890, %v1887, %v1889
        %1897 = vrot.lane.b32.xlu0 %v1769, 119
        %v1898 = vpop.permute.xlu0 %1897
        %1899 = vrot.lane.b32.xlu0 %v1770, 119
        %v1900 = vpop.permute.xlu0 %1899
        %1901 = vrot.lane.b32.xlu0 %v1771, 119
        %v1902 = vpop.permute.xlu0 %1901
        %1903 = vrot.lane.b32.xlu0 %v1772, 119
        %v1904 = vpop.permute.xlu0 %1903
        %vm1905 = vcmask 973824
        %v1906 = vsel %vm1905, %v1898, %v1900
        %v1907 = vsel %vm1905, %v1902, %v1904
        %1912 = vrot.lane.b32.xlu0 %v1769, 118
        %v1913 = vpop.permute.xlu0 %1912
        %1914 = vrot.lane.b32.xlu0 %v1770, 118
        %v1915 = vpop.permute.xlu0 %1914
        %1916 = vrot.lane.b32.xlu0 %v1771, 118
        %v1917 = vpop.permute.xlu0 %1916
        %1918 = vrot.lane.b32.xlu0 %v1772, 118
        %v1919 = vpop.permute.xlu0 %1918
        %vm1920 = vcmask 965632
        %v1921 = vsel %vm1920, %v1913, %v1915
        %v1922 = vsel %vm1920, %v1917, %v1919
        %1927 = vrot.lane.b32.xlu0 %v1769, 117
        %v1928 = vpop.permute.xlu0 %1927
        %1929 = vrot.lane.b32.xlu0 %v1770, 117
        %v1930 = vpop.permute.xlu0 %1929
        %1931 = vrot.lane.b32.xlu0 %v1771, 117
        %v1932 = vpop.permute.xlu0 %1931
        %1933 = vrot.lane.b32.xlu0 %v1772, 117
        %v1934 = vpop.permute.xlu0 %1933
        %vm1935 = vcmask 957440
        %v1936 = vsel %vm1935, %v1928, %v1930
        %v1937 = vsel %vm1935, %v1932, %v1934
        %1942 = vrot.lane.b32.xlu0 %v1769, 116
        %v1943 = vpop.permute.xlu0 %1942
        %1944 = vrot.lane.b32.xlu0 %v1770, 116
        %v1945 = vpop.permute.xlu0 %1944
        %1946 = vrot.lane.b32.xlu0 %v1771, 116
        %v1947 = vpop.permute.xlu0 %1946
        %1948 = vrot.lane.b32.xlu0 %v1772, 116
        %v1949 = vpop.permute.xlu0 %1948
        %vm1950 = vcmask 949248
        %v1951 = vsel %vm1950, %v1943, %v1945
        %v1952 = vsel %vm1950, %v1947, %v1949
        %1957 = vrot.lane.b32.xlu0 %v1769, 115
        %v1958 = vpop.permute.xlu0 %1957
        %1959 = vrot.lane.b32.xlu0 %v1770, 115
        %v1960 = vpop.permute.xlu0 %1959
        %1961 = vrot.lane.b32.xlu0 %v1771, 115
        %v1962 = vpop.permute.xlu0 %1961
        %1963 = vrot.lane.b32.xlu0 %v1772, 115
        %v1964 = vpop.permute.xlu0 %1963
        %vm1965 = vcmask 941056
        %v1966 = vsel %vm1965, %v1958, %v1960
        %v1967 = vsel %vm1965, %v1962, %v1964
        %1972 = vrot.lane.b32.xlu0 %v1769, 114
        %v1973 = vpop.permute.xlu0 %1972
        %1974 = vrot.lane.b32.xlu0 %v1770, 114
        %v1975 = vpop.permute.xlu0 %1974
        %1976 = vrot.lane.b32.xlu0 %v1771, 114
        %v1977 = vpop.permute.xlu0 %1976
        %1978 = vrot.lane.b32.xlu0 %v1772, 114
        %v1979 = vpop.permute.xlu0 %1978
        %vm1980 = vcmask 932864
        %v1981 = vsel %vm1980, %v1973, %v1975
        %v1982 = vsel %vm1980, %v1977, %v1979
        %1988 = vset.pattern.permute.xlu0 0
        %1989 = vperm.xlu0 %1988, %v401
        %v1990 = vpop.permute.xlu0 %1989
        %1993 = vset.pattern.permute.xlu0 0
        %1994 = vperm.xlu0 %1993, %v402
        %v1995 = vpop.permute.xlu0 %1994
        %1998 = vset.pattern.permute.xlu0 0
        %1999 = vperm.xlu0 %1998, %v403
        %v2000 = vpop.permute.xlu0 %1999
        %2003 = vset.pattern.permute.xlu0 0
        %2004 = vperm.xlu0 %2003, %v404
        %v2005 = vpop.permute.xlu0 %2004
        %v2015 = vunpack.c.l.b16 %v393
        %v2016 = vunpack.c.h.b16 %v393
        %v2017 = vunpack.c.l.b16 %v394
        %v2018 = vunpack.c.h.b16 %v394
        %v2019 = vunpack.c.l.b16 %v395
        %v2020 = vunpack.c.h.b16 %v395
        %v2021 = vunpack.c.l.b16 %v396
        %v2022 = vunpack.c.h.b16 %v396
        %v2023 = vunpack.c.l.b16 %v397
        %v2024 = vunpack.c.h.b16 %v397
        %v2025 = vunpack.c.l.b16 %v398
        %v2026 = vunpack.c.h.b16 %v398
        %v2027 = vunpack.c.l.b16 %v399
        %v2028 = vunpack.c.h.b16 %v399
        %v2029 = vunpack.c.l.b16 %v400
        %v2030 = vunpack.c.h.b16 %v400
        %v2031 = vpack.c.b16 %v2019, %v2015
        %v2032 = vpack.c.b16 %v2020, %v2016
        %v2033 = vpack.c.b16 %v2021, %v2017
        %v2034 = vpack.c.b16 %v2022, %v2018
        %v2035 = vpack.c.b16 %v2027, %v2023
        %v2036 = vpack.c.b16 %v2028, %v2024
        %v2037 = vpack.c.b16 %v2029, %v2025
        %v2038 = vpack.c.b16 %v2030, %v2026
        %vm2045 = vcmask 785408
        %v2047 = vsel %vm2045, %v2034, 0
        %v2050 = vsel %vm2045, %v2038, 0
        %2052 = vmatprep.subr.bf16.mxu0 %v1770
        %2053 = vmatpush1.bf16.msra.mxu0 %v1769
        %2054 = vmatprep.subr.bf16.mxu0 %v1772
        %2055 = vmatpush1.bf16.msra.mxu0 %v1771
        %2056 = vmatprep.subr.bf16.mxu0 %v1780
        %2057 = vmatpush1.bf16.msra.mxu0 %v1786
        %2058 = vmatprep.subr.bf16.mxu0 %v1784
        %2059 = vmatpush1.bf16.msra.mxu0 %v1787
        %2060 = vmatprep.subr.bf16.mxu0 %v1795
        %2061 = vmatpush1.bf16.msra.mxu0 %v1801
        %2062 = vmatprep.subr.bf16.mxu0 %v1799
        %2063 = vmatpush1.bf16.msra.mxu0 %v1802
        %2064 = vmatprep.subr.bf16.mxu0 %v1810
        %2065 = vmatpush1.bf16.msra.mxu0 %v1816
        %2066 = vmatprep.subr.bf16.mxu0 %v1814
        %2067 = vmatpush1.bf16.msra.mxu0 %v1817
        %2068 = vmatprep.subr.bf16.mxu0 %v1825
        %2069 = vmatpush1.bf16.msra.mxu0 %v1831
        %2070 = vmatprep.subr.bf16.mxu0 %v1829
        %2071 = vmatpush1.bf16.msra.mxu0 %v1832
        %2072 = vmatprep.subr.bf16.mxu0 %v1840
        %2073 = vmatpush1.bf16.msra.mxu0 %v1846
        %2074 = vmatprep.subr.bf16.mxu0 %v1844
        %2075 = vmatpush1.bf16.msra.mxu0 %v1847
        %2076 = vmatprep.subr.bf16.mxu0 %v1855
        %2077 = vmatpush1.bf16.msra.mxu0 %v1861
        %2078 = vmatprep.subr.bf16.mxu0 %v1859
        %2079 = vmatpush1.bf16.msra.mxu0 %v1862
        %2080 = vmatprep.subr.bf16.mxu0 %v1870
        %2081 = vmatpush1.bf16.msra.mxu0 %v1876
        %2082 = vmatprep.subr.bf16.mxu0 %v1874
        %2083 = vmatpush1.bf16.msra.mxu0 %v1877
        %2084 = vmatprep.mubr.bf16.mxu0 %v2032
        %2085 = vmatmul.mubr.bf16.gmra.mrb[0].mxu0 %v2031
        %v2086 = vpop.f32.mrb[0].mxu0
        %v2087 = vadd.f32 %v1990, %v2086
        %v2088 = vpop.f32.mrb[0].mxu0
        %v2089 = vadd.f32 %v1990, %v2088
        %v2090 = vpop.f32.mrb[0].mxu0
        %v2091 = vadd.f32 %v1995, %v2090
        %v2092 = vpop.f32.mrb[0].mxu0
        %v2093 = vadd.f32 %v1995, %v2092
        %2094 = vmatprep.mubr.bf16.mxu0 %v2036
        %2095 = vmatmul.mubr.bf16.gmra.mrb[0].mxu0 %v2035
        %v2096 = vpop.f32.mrb[0].mxu0
        %v2097 = vadd.f32 %v2000, %v2096
        %v2098 = vpop.f32.mrb[0].mxu0
        %v2099 = vadd.f32 %v2000, %v2098
        %v2100 = vpop.f32.mrb[0].mxu0
        %v2101 = vadd.f32 %v2005, %v2100
        %v2102 = vpop.f32.mrb[0].mxu0
        %v2103 = vadd.f32 %v2005, %v2102
        %2104 = vdwg.mxu0
        %2105 = vmatprep.subr.bf16.mxu0 %v1885
        %2106 = vmatpush1.bf16.msra.mxu0 %v1891
        %2107 = vmatprep.subr.bf16.mxu0 %v1889
        %2108 = vmatpush1.bf16.msra.mxu0 %v1892
        %2109 = vmatprep.subr.bf16.mxu0 %v1900
        %2110 = vmatpush1.bf16.msra.mxu0 %v1906
        %2111 = vmatprep.subr.bf16.mxu0 %v1904
        %2112 = vmatpush1.bf16.msra.mxu0 %v1907
        %2113 = vmatprep.subr.bf16.mxu0 %v1915
        %2114 = vmatpush1.bf16.msra.mxu0 %v1921
        %2115 = vmatprep.subr.bf16.mxu0 %v1919
        %2116 = vmatpush1.bf16.msra.mxu0 %v1922
        %2117 = vmatprep.subr.bf16.mxu0 %v1930
        %2118 = vmatpush1.bf16.msra.mxu0 %v1936
        %2119 = vmatprep.subr.bf16.mxu0 %v1934
        %2120 = vmatpush1.bf16.msra.mxu0 %v1937
        %2121 = vmatprep.subr.bf16.mxu0 %v1945
        %2122 = vmatpush1.bf16.msra.mxu0 %v1951
        %2123 = vmatprep.subr.bf16.mxu0 %v1949
        %2124 = vmatpush1.bf16.msra.mxu0 %v1952
        %2125 = vmatprep.subr.bf16.mxu0 %v1960
        %2126 = vmatpush1.bf16.msra.mxu0 %v1966
        %2127 = vmatprep.subr.bf16.mxu0 %v1964
        %2128 = vmatpush1.bf16.msra.mxu0 %v1967
        %2129 = vmatprep.subr.bf16.mxu0 %v1975
        %2130 = vmatpush1.bf16.msra.mxu0 %v1981
        %2131 = vmatprep.subr.bf16.mxu0 %v1979
        %2132 = vmatpush1.bf16.msra.mxu0 %v1982
        %2133 = vmatprep.subr.bf16.mxu0 0
        %2134 = vmatpush1.bf16.msra.mxu0 0
        %2135 = vmatprep.subr.bf16.mxu0 0
        %2136 = vmatpush1.bf16.msra.mxu0 0
        %2137 = vmatprep.mubr.bf16.mxu0 %v2047
        %2138 = vmatmul.mubr.bf16.gmra.mrb[0].mxu0 %v2033
        %v2139 = vpop.f32.mrb[0].mxu0
        %v2140 = vadd.f32 %v2087, %v2139
        %v2141 = vpop.f32.mrb[0].mxu0
        %v2142 = vadd.f32 %v2089, %v2141
        %v2143 = vpop.f32.mrb[0].mxu0
        %v2144 = vadd.f32 %v2091, %v2143
        %v2145 = vpop.f32.mrb[0].mxu0
        %v2146 = vadd.f32 %v2093, %v2145
        %2147 = vmatprep.mubr.bf16.mxu0 %v2050
        %2148 = vmatmul.mubr.bf16.gmra.mrb[0].mxu0 %v2037
        %v2149 = vpop.f32.mrb[0].mxu0
        %v2150 = vadd.f32 %v2097, %v2149
        %v2151 = vpop.f32.mrb[0].mxu0
        %v2152 = vadd.f32 %v2099, %v2151
        %v2153 = vpop.f32.mrb[0].mxu0
        %v2154 = vadd.f32 %v2101, %v2153
        %v2155 = vpop.f32.mrb[0].mxu0
        %v2156 = vadd.f32 %v2103, %v2155
        %2157 = vdwg.mxu0
        %vm2158 = vcmp.gt.f32.partialorder %v2140, 0.0
        %vm2159 = vcmp.gt.f32.partialorder %v2142, 0.0
        %vm2160 = vcmp.gt.f32.partialorder %v2144, 0.0
        %vm2161 = vcmp.gt.f32.partialorder %v2146, 0.0
        %vm2162 = vcmp.gt.f32.partialorder %v2150, 0.0
        %vm2163 = vcmp.gt.f32.partialorder %v2152, 0.0
        %vm2164 = vcmp.gt.f32.partialorder %v2154, 0.0
        %vm2165 = vcmp.gt.f32.partialorder %v2156, 0.0
        %v2166 = vmin.f32 %v2140, 0.0
        %v2167 = vmin.f32 %v2142, 0.0
        %v2168 = vmin.f32 %v2144, 0.0
        %v2169 = vmin.f32 %v2146, 0.0
        %v2170 = vmin.f32 %v2150, 0.0
        %v2171 = vmin.f32 %v2152, 0.0
        %v2172 = vmin.f32 %v2154, 0.0
        %v2173 = vmin.f32 %v2156, 0.0
        %v2174 = vmul.f32 %v2166, 1.442695
        %v2175 = vpow.pop %v2174
        %v2176 = vmul.f32 %v2167, 1.442695
        %v2177 = vpow.pop %v2176
        %v2178 = vmul.f32 %v2168, 1.442695
        %v2179 = vpow.pop %v2178
        %v2180 = vmul.f32 %v2169, 1.442695
        %v2181 = vpow.pop %v2180
        %v2182 = vmul.f32 %v2170, 1.442695
        %v2183 = vpow.pop %v2182
        %v2184 = vmul.f32 %v2171, 1.442695
        %v2185 = vpow.pop %v2184
        %v2186 = vmul.f32 %v2172, 1.442695
        %v2187 = vpow.pop %v2186
        %v2188 = vmul.f32 %v2173, 1.442695
        %v2189 = vpow.pop %v2188
        %v2190 = vsub.f32 %v2175, 1.0
        %v2191 = vsub.f32 %v2177, 1.0
        %v2192 = vsub.f32 %v2179, 1.0
        %v2193 = vsub.f32 %v2181, 1.0
        %v2194 = vsub.f32 %v2183, 1.0
        %v2195 = vsub.f32 %v2185, 1.0
        %v2196 = vsub.f32 %v2187, 1.0
        %v2197 = vsub.f32 %v2189, 1.0
        %v2198 = vsel %vm2158, %v2140, %v2190
        %v2199 = vsel %vm2159, %v2142, %v2191
        %v2200 = vsel %vm2160, %v2144, %v2192
        %v2201 = vsel %vm2161, %v2146, %v2193
        %v2202 = vsel %vm2162, %v2150, %v2194
        %v2203 = vsel %vm2163, %v2152, %v2195
        %v2204 = vsel %vm2164, %v2154, %v2196
        %v2205 = vsel %vm2165, %v2156, %v2197
        %v2206 = vpack.c.bf16 %v2200, %v2198
        %v2207 = vpack.c.bf16 %v2201, %v2199
        %v2208 = vpack.c.bf16 %v2204, %v2202
        %v2209 = vpack.c.bf16 %v2205, %v2203
        %v2234 = vunpack.c.l.b16 %v501
        %v2235 = vunpack.c.l.b16 %v502
        %v2236 = vunpack.c.l.b16 %v503
        %v2237 = vunpack.c.l.b16 %v504
        %v2238 = vunpack.c.l.b16 %v505
        %v2239 = vunpack.c.l.b16 %v506
        %v2240 = vunpack.c.l.b16 %v507
        %v2241 = vunpack.c.l.b16 %v508
        %v2242 = vunpack.c.l.b16 %v509
        %v2243 = vunpack.c.l.b16 %v510
        %v2244 = vunpack.c.l.b16 %v511
        %v2245 = vunpack.c.l.b16 %v512
        %v2246 = vunpack.c.l.b16 %v513
        %v2247 = vunpack.c.l.b16 %v514
        %v2248 = vunpack.c.l.b16 %v515
        %v2249 = vunpack.c.l.b16 %v516
        %v2250 = vunpack.c.l.b16 %v517
        %v2251 = vunpack.c.l.b16 %v518
        %v2252 = vunpack.c.l.b16 %v519
        %v2253 = vunpack.c.l.b16 %v520
        %v2254 = vunpack.c.l.b16 %v521
        %v2255 = vunpack.c.l.b16 %v522
        %v2256 = vunpack.c.l.b16 %v523
        %v2257 = vunpack.c.l.b16 %v524
        %v2258 = vpack.c.b16 %v2235, %v2234
        %v2259 = vpack.c.b16 %v2237, %v2236
        %v2260 = vpack.c.b16 %v2239, %v2238
        %v2261 = vpack.c.b16 %v2241, %v2240
        %v2262 = vpack.c.b16 %v2243, %v2242
        %v2263 = vpack.c.b16 %v2245, %v2244
        %v2264 = vpack.c.b16 %v2247, %v2246
        %v2265 = vpack.c.b16 %v2249, %v2248
        %v2266 = vpack.c.b16 %v2251, %v2250
        %v2267 = vpack.c.b16 %v2253, %v2252
        %v2268 = vpack.c.b16 %v2255, %v2254
        %v2269 = vpack.c.b16 %v2257, %v2256
        %vm2281 = vcmask 482304
        %v2283 = vsel %vm2281, %v2207, 0
        %v2286 = vsel %vm2281, %v2209, 0
        %vm2288 = vcmask 1044480
        %vm2289 = vcmask 1045504
        %v2290 = vsel %vm2288, 4294967295, 65535
        %v2291 = vsel %vm2289, %v2290, 0
        %v2293 = vand.u32 %v2269, %v2291
        %2295 = vmatprep.subr.bf16.mxu0 0
        %2296 = vmatpush1.bf16.msra.mxu0 %v2258
        %2297 = vmatprep.subr.bf16.mxu0 0
        %2298 = vmatpush1.bf16.msra.mxu0 %v2259
        %2299 = vmatprep.subr.bf16.mxu0 0
        %2300 = vmatpush1.bf16.msra.mxu0 %v2260
        %2301 = vmatprep.subr.bf16.mxu0 0
        %2302 = vmatpush1.bf16.msra.mxu0 %v2261
        %2303 = vmatprep.subr.bf16.mxu0 0
        %2304 = vmatpush1.bf16.msra.mxu0 %v2262
        %2305 = vmatprep.subr.bf16.mxu0 0
        %2306 = vmatpush1.bf16.msra.mxu0 %v2263
        %2307 = vmatprep.subr.bf16.mxu0 0
        %2308 = vmatpush1.bf16.msra.mxu0 %v2264
        %2309 = vmatprep.subr.bf16.mxu0 0
        %2310 = vmatpush1.bf16.msra.mxu0 %v2265
        %2311 = vmatprep.subr.bf16.mxu0 0
        %2312 = vmatpush1.bf16.msra.mxu0 %v2266
        %2313 = vmatprep.subr.bf16.mxu0 0
        %2314 = vmatpush1.bf16.msra.mxu0 %v2267
        %2315 = vmatprep.subr.bf16.mxu0 0
        %2316 = vmatpush1.bf16.msra.mxu0 %v2268
        %2317 = vmatprep.subr.bf16.mxu0 0
        %2318 = vmatpush1.bf16.msra.mxu0 %v2293
        %2319 = vmatprep.subr.bf16.mxu0 0
        %2320 = vmatpush1.bf16.msra.mxu0 0
        %2321 = vmatprep.subr.bf16.mxu0 0
        %2322 = vmatpush1.bf16.msra.mxu0 0
        %2323 = vmatprep.subr.bf16.mxu0 0
        %2324 = vmatpush1.bf16.msra.mxu0 0
        %2325 = vmatprep.subr.bf16.mxu0 0
        %2326 = vmatpush1.bf16.msra.mxu0 0
        %2327 = vmatprep.mubr.bf16.mxu0 %v2283
        %2328 = vmatmul.mubr.bf16.gmra.mrb[0].mxu0 %v2206
        %v2329 = vpop.f32.mrb[0].mxu0
        %v2330 = vadd.f32 0.0, %v2329
        %v2331 = vpop.f32.mrb[0].mxu0
        %v2332 = vpop.f32.mrb[0].mxu0
        %v2333 = vadd.f32 0.0, %v2332
        %v2334 = vpop.f32.mrb[0].mxu0
        %2335 = vmatprep.mubr.bf16.mxu0 %v2286
        %2336 = vmatmul.mubr.bf16.gmra.mrb[0].mxu0 %v2208
        %v2337 = vpop.f32.mrb[0].mxu0
        %v2338 = vadd.f32 0.0, %v2337
        %v2339 = vpop.f32.mrb[0].mxu0
        %v2340 = vpop.f32.mrb[0].mxu0
        %v2341 = vadd.f32 0.0, %v2340
        %v2342 = vpop.f32.mrb[0].mxu0
        %2343 = vdwg.mxu0
        %vm2344 = vcmask 187392
        %2345 = vst.msk [vmem:[#allocation2] sm:$0xff] %vm2344, %v2330
        %2346 = vst.msk [vmem:[#allocation2 + $0x8] sm:$0xff] %vm2344, %v2333
        %2347 = vst.msk [vmem:[#allocation2 + $0x10] sm:$0xff] %vm2344, %v2338
        %2348 = vst.msk [vmem:[#allocation2 + $0x18] sm:$0xff] %vm2344, %v2341
        %v2349 = vld [vmem:[#allocation2] sm:$0xff]
        %v2350 = vld [vmem:[#allocation2 + $0x8] sm:$0xff]
        %v2351 = vld [vmem:[#allocation2 + $0x10] sm:$0xff]
        %v2352 = vld [vmem:[#allocation2 + $0x18] sm:$0xff]
        %v2353 = vld [vmem:[%s7] sm:$0xff]
        %v2354 = vld [vmem:[%s7 + $0x8] sm:$0xff]
        %v2355 = vld [vmem:[%s7 + $0x10] sm:$0xff]
        %v2356 = vld [vmem:[%s7 + $0x18] sm:$0xff]
        %v2357 = vmul.f32 %v2349, %v2353
        %v2358 = vmul.f32 %v2350, %v2354
        %v2359 = vmul.f32 %v2351, %v2355
        %v2360 = vmul.f32 %v2352, %v2356
        %s2361 = scalar_lea.vmem %s7, 32
        %v2362 = vld [vmem:[%s2361] sm:$0xff]
        %v2363 = vld [vmem:[%s2361 + $0x8] sm:$0xff]
        %v2364 = vld [vmem:[%s2361 + $0x10] sm:$0xff]
        %v2365 = vld [vmem:[%s2361 + $0x18] sm:$0xff]
        %v2366 = vmul.f32 %v2349, %v2362
        %v2367 = vmul.f32 %v2350, %v2363
        %v2368 = vmul.f32 %v2351, %v2364
        %v2369 = vmul.f32 %v2352, %v2365
        %2374 = vrot.lane.b32.xlu0 %v2366, 23
        %v2375 = vpop.permute.xlu0 %2374
        %2376 = vrot.lane.b32.xlu0 %v2367, 23
        %v2377 = vpop.permute.xlu0 %2376
        %2378 = vrot.lane.b32.xlu0 %v2368, 23
        %v2379 = vpop.permute.xlu0 %2378
        %2380 = vrot.lane.b32.xlu0 %v2369, 23
        %v2381 = vpop.permute.xlu0 %2380
        %v2386 = vsel %vm2344, %v2357, %v2375
        %v2387 = vsel %vm2344, %v2358, %v2377
        %v2388 = vsel %vm2344, %v2359, %v2379
        %v2389 = vsel %vm2344, %v2360, %v2381
        %v2390 = vld [vmem:[%s8] sm:$0xff]
        %v2391 = vld [vmem:[%s8 + $0x8] sm:$0xff]
        %v2392 = vld [vmem:[%s8 + $0x10] sm:$0xff]
        %v2393 = vld [vmem:[%s8 + $0x18] sm:$0xff]
        %v2394 = vld [vmem:[%s8 + $0x20] sm:$0xff]
        %v2395 = vld [vmem:[%s8 + $0x28] sm:$0x3f]
        %vm2396 = vcmask 375808
        %v2398 = vsel %vm2396, %v2386, 0
        %v2401 = vsel %vm2396, %v2387, 0
        %v2404 = vsel %vm2396, %v2388, 0
        %v2407 = vsel %vm2396, %v2389, 0
        %v2410 = vsel %vm2289, %v2395, 0
        %2412 = vmatprep.subr.mxu0 0.0
        %2413 = vmatpush1.msra.mxu0 %v2390
        %2414 = vmatprep.subr.mxu0 0.0
        %2415 = vmatpush1.msra.mxu0 %v2391
        %2416 = vmatprep.subr.mxu0 0.0
        %2417 = vmatpush1.msra.mxu0 %v2392
        %2418 = vmatprep.subr.mxu0 0.0
        %2419 = vmatpush1.msra.mxu0 %v2393
        %2420 = vmatprep.subr.mxu0 0.0
        %2421 = vmatpush1.msra.mxu0 %v2394
        %2422 = vmatprep.subr.mxu0 0.0
        %2423 = vmatpush1.msra.mxu0 %v2410
        %2424 = vmatprep.subr.mxu0 0.0
        %2425 = vmatpush1.msra.mxu0 0.0
        %2426 = vmatprep.subr.mxu0 0.0
        %2427 = vmatpush1.msra.mxu0 0.0
        %2428 = vmatprep.subr.mxu0 0.0
        %2429 = vmatpush1.msra.mxu0 0.0
        %2430 = vmatprep.subr.mxu0 0.0
        %2431 = vmatpush1.msra.mxu0 0.0
        %2432 = vmatprep.subr.mxu0 0.0
        %2433 = vmatpush1.msra.mxu0 0.0
        %2434 = vmatprep.subr.mxu0 0.0
        %2435 = vmatpush1.msra.mxu0 0.0
        %2436 = vmatprep.subr.mxu0 0.0
        %2437 = vmatpush1.msra.mxu0 0.0
        %2438 = vmatprep.subr.mxu0 0.0
        %2439 = vmatpush1.msra.mxu0 0.0
        %2440 = vmatprep.subr.mxu0 0.0
        %2441 = vmatpush1.msra.mxu0 0.0
        %2442 = vmatprep.subr.mxu0 0.0
        %2443 = vmatpush1.msra.mxu0 0.0
        %2444 = vmatprep.subr.mxu0 0.0
        %2445 = vmatpush1.msra.mxu0 0.0
        %2446 = vmatprep.subr.mxu0 0.0
        %2447 = vmatpush1.msra.mxu0 0.0
        %2448 = vmatprep.subr.mxu0 0.0
        %2449 = vmatpush1.msra.mxu0 0.0
        %2450 = vmatprep.subr.mxu0 0.0
        %2451 = vmatpush1.msra.mxu0 0.0
        %2452 = vmatprep.subr.mxu0 0.0
        %2453 = vmatpush1.msra.mxu0 0.0
        %2454 = vmatprep.subr.mxu0 0.0
        %2455 = vmatpush1.msra.mxu0 0.0
        %2456 = vmatprep.subr.mxu0 0.0
        %2457 = vmatpush1.msra.mxu0 0.0
        %2458 = vmatprep.subr.mxu0 0.0
        %2459 = vmatpush1.msra.mxu0 0.0
        %2460 = vmatprep.subr.mxu0 0.0
        %2461 = vmatpush1.msra.mxu0 0.0
        %2462 = vmatprep.subr.mxu0 0.0
        %2463 = vmatpush1.msra.mxu0 0.0
        %2464 = vmatprep.subr.mxu0 0.0
        %2465 = vmatpush1.msra.mxu0 0.0
        %2466 = vmatprep.subr.mxu0 0.0
        %2467 = vmatpush1.msra.mxu0 0.0
        %2468 = vmatprep.subr.mxu0 0.0
        %2469 = vmatpush1.msra.mxu0 0.0
        %2470 = vmatprep.subr.mxu0 0.0
        %2471 = vmatpush1.msra.mxu0 0.0
        %2472 = vmatprep.subr.mxu0 0.0
        %2473 = vmatpush1.msra.mxu0 0.0
        %2474 = vmatprep.subr.mxu0 0.0
        %2475 = vmatpush1.msra.mxu0 0.0
        %2476 = vmatprep.mubr.f32.mxu0 0.0
        %2477 = vmatmul.mubr.f32.gmra.mrb[0].mxu0 %v2398
        %v2478 = vpop.f32.mrb[0].mxu0
        %v2479 = vadd.f32 0.0, %v2478
        %v2480 = vpop.f32.mrb[0].mxu0
        %2481 = vmatprep.mubr.f32.mxu0 0.0
        %2482 = vmatmul.mubr.f32.gmra.mrb[0].mxu0 %v2401
        %v2483 = vpop.f32.mrb[0].mxu0
        %v2484 = vadd.f32 0.0, %v2483
        %v2485 = vpop.f32.mrb[0].mxu0
        %2486 = vmatprep.mubr.f32.mxu0 0.0
        %2487 = vmatmul.mubr.f32.gmra.mrb[0].mxu0 %v2404
        %v2488 = vpop.f32.mrb[0].mxu0
        %v2489 = vadd.f32 0.0, %v2488
        %v2490 = vpop.f32.mrb[0].mxu0
        %2491 = vmatprep.mubr.f32.mxu0 0.0
        %2492 = vmatmul.mubr.f32.gmra.mrb[0].mxu0 %v2407
        %v2493 = vpop.f32.mrb[0].mxu0
        %v2494 = vadd.f32 0.0, %v2493
        %v2495 = vpop.f32.mrb[0].mxu0
        %2496 = vdwg.mxu0
        %v2497 = vld [vmem:[%s9] sm:$0x1]
        %v2498 = vld [vmem:[%s10] sm:$0x1]
        %vm2499 = vcmask 261120
        %v2501 = vsel %vm2499, %v2497, 0
        %2503 = vmatprep.subr.mxu0 0.0
        %2504 = vmatpush1.msra.mxu0 %v2479
        %2505 = vmatprep.subr.mxu0 0.0
        %2506 = vmatpush1.msra.mxu0 %v2484
        %2507 = vmatprep.subr.mxu0 0.0
        %2508 = vmatpush1.msra.mxu0 %v2489
        %2509 = vmatprep.subr.mxu0 0.0
        %2510 = vmatpush1.msra.mxu0 %v2494
        %2511 = vmatprep.subr.mxu0 0.0
        %2512 = vmatpush1.msra.mxu0 0.0
        %2513 = vmatprep.subr.mxu0 0.0
        %2514 = vmatpush1.msra.mxu0 0.0
        %2515 = vmatprep.subr.mxu0 0.0
        %2516 = vmatpush1.msra.mxu0 0.0
        %2517 = vmatprep.subr.mxu0 0.0
        %2518 = vmatpush1.msra.mxu0 0.0
        %2519 = vmatprep.subr.mxu0 0.0
        %2520 = vmatpush1.msra.mxu0 0.0
        %2521 = vmatprep.subr.mxu0 0.0
        %2522 = vmatpush1.msra.mxu0 0.0
        %2523 = vmatprep.subr.mxu0 0.0
        %2524 = vmatpush1.msra.mxu0 0.0
        %2525 = vmatprep.subr.mxu0 0.0
        %2526 = vmatpush1.msra.mxu0 0.0
        %2527 = vmatprep.subr.mxu0 0.0
        %2528 = vmatpush1.msra.mxu0 0.0
        %2529 = vmatprep.subr.mxu0 0.0
        %2530 = vmatpush1.msra.mxu0 0.0
        %2531 = vmatprep.subr.mxu0 0.0
        %2532 = vmatpush1.msra.mxu0 0.0
        %2533 = vmatprep.subr.mxu0 0.0
        %2534 = vmatpush1.msra.mxu0 0.0
        %2535 = vmatprep.subr.mxu0 0.0
        %2536 = vmatpush1.msra.mxu0 0.0
        %2537 = vmatprep.subr.mxu0 0.0
        %2538 = vmatpush1.msra.mxu0 0.0
        %2539 = vmatprep.subr.mxu0 0.0
        %2540 = vmatpush1.msra.mxu0 0.0
        %2541 = vmatprep.subr.mxu0 0.0
        %2542 = vmatpush1.msra.mxu0 0.0
        %2543 = vmatprep.subr.mxu0 0.0
        %2544 = vmatpush1.msra.mxu0 0.0
        %2545 = vmatprep.subr.mxu0 0.0
        %2546 = vmatpush1.msra.mxu0 0.0
        %2547 = vmatprep.subr.mxu0 0.0
        %2548 = vmatpush1.msra.mxu0 0.0
        %2549 = vmatprep.subr.mxu0 0.0
        %2550 = vmatpush1.msra.mxu0 0.0
        %2551 = vmatprep.subr.mxu0 0.0
        %2552 = vmatpush1.msra.mxu0 0.0
        %2553 = vmatprep.subr.mxu0 0.0
        %2554 = vmatpush1.msra.mxu0 0.0
        %2555 = vmatprep.subr.mxu0 0.0
        %2556 = vmatpush1.msra.mxu0 0.0
        %2557 = vmatprep.subr.mxu0 0.0
        %2558 = vmatpush1.msra.mxu0 0.0
        %2559 = vmatprep.subr.mxu0 0.0
        %2560 = vmatpush1.msra.mxu0 0.0
        %2561 = vmatprep.subr.mxu0 0.0
        %2562 = vmatpush1.msra.mxu0 0.0
        %2563 = vmatprep.subr.mxu0 0.0
        %2564 = vmatpush1.msra.mxu0 0.0
        %2565 = vmatprep.subr.mxu0 0.0
        %2566 = vmatpush1.msra.mxu0 0.0
        %2567 = vmatprep.mubr.f32.mxu0 0.0
        %2568 = vmatmul.mubr.f32.gmra.mrb[0].mxu0 %v2501
        %v2569 = vpop.f32.mrb[0].mxu0
        %v2570 = vadd.f32 %v2498, %v2569
        %v2571 = vpop.f32.mrb[0].mxu0
        %2572 = vdwg.mxu0
        %vm2573 = vcmask 8192
        %2574 = vst.msk [vmem:[%s378] sm:$0x1] %vm2573, %v2570
        %s2575 = sand.u32 %s269, 1
        %s2576 = scalar_lea.sflag [#allocation4], %s2575
        %s2577 = sand.u32 %s269, 1
        %s2578 = scalar_lea.vmem [#allocation3], %s2577
        // Predicated region
        $region65: #{tpu_custom_call.1} parent=63 // pred_check
          %p2579 = pneg %p279
        $region66: #{tpu_custom_call.1} parent=63 // pred_check_branch
          %2581 = sbr.rel (%p2579) target = $region68
        $region67: #{tpu_custom_call.1} parent=63 // pred_region
          %s2583 = ssub.s32 16, 16
          %2584 = vsyncadd %s2576, %s2583
          %s2585 = smul.addr %s25, 16
          %s2586 = scalar_lea.hbm %s11, %s2585
          %s2588 = sshll.u32 %s2578, 4
          %s2589 = int_to_ptr.vmem [resolvable:$true] %s2588
          %2591 = dma.vmem_to_hbm [thread:$0]  %s2589, 16, %s2586, %s2576
        $region68: #{tpu_custom_call.1} parent=63 // pred_fallthru
          _
      $region64: #{tpu_custom_call.1} parent=5 // pred_fallthru
        _
      %p2592 = scmp.le.s32.totalorder 2, %s20
      // Predicated region
      $region69: #{tpu_custom_call.1} parent=5 // pred_check
        %p2593 = pneg %p2592
      $region70: #{tpu_custom_call.1} parent=5 // pred_check_branch
        %2595 = sbr.rel (%p2593) target = $region72
      $region71: #{tpu_custom_call.1} parent=5 // pred_region
        %s2596 = ssub.s32 %s20, 2
        // Predicated region
        $region73: #{tpu_custom_call.1} parent=71 // pred_check
          %p2597 = pneg %p285
        $region74: #{tpu_custom_call.1} parent=71 // pred_check_branch
          %2599 = sbr.rel (%p2597) target = $region76
        $region75: #{tpu_custom_call.1} parent=71 // pred_region
          %s2600 = sand.u32 %s270, 1
          %s2601 = scalar_lea.sflag [#allocation4], %s2600
          %s2602 = sand.u32 %s270, 1
          %s2603 = scalar_lea.vmem [#allocation3], %s2602
          %2604 = dma.done %s2601, 16
        $region76: #{tpu_custom_call.1} parent=71 // pred_fallthru
          _
      $region72: #{tpu_custom_call.1} parent=5 // pred_fallthru
        _
    $region6: #{tpu_custom_call.1} parent=1 // loop_footer
      %s24 = sadd.s32 1, %s20
    $region7: #{tpu_custom_call.1} parent=1 // loop_footer_branch
      %19 = sbr.rel target = $region3
    $region8: #{tpu_custom_call.1} parent=1 // loop_exit
      _
    %2605 = vsyncpa [#allocation4], 1
    %s2606 = scalar_lea.sflag [#allocation4], 1
    %2607 = vsyncpa %s2606, 1

</llo_original>
